<compile_context>
chip_gen: v7x
topology: tpu7x:2x2x1
jax: 0.10.0
libtpu: 0.0.40
codegen_flags: <defaults>
</compile_context>

<pallas_src>
import functools

import jax
import jax.numpy as jnp
from jax import lax
from jax.experimental import pallas as pl
from jax.experimental.pallas import tpu as pltpu

NEG_SLOPE = 0.01  # PyTorch LeakyReLU default
EPS = 1e-5        # PyTorch BatchNorm2d default


def _make_kernel(cin, cout, th, w_in):
    r2 = cout * 2 * th     # output rows of the band, ordered (co, 2t+kh)
    w2 = 2 * w_in          # output lanes of the band, ordered 2j+kw

    def kernel(b_ref, s_ref, shift_ref, x_ref, o_ref):
        # b_ref:     (2, Cin, R2, TH) f32  scale-folded block-diagonal deconv weights (per kw, cin)
        # s_ref:     (2, W, 2W)       f32  0/1 lane-scatter matrices (kw interleave)
        # shift_ref: (R2, 1)          f32  BN shift, repeated per output row
        # x_ref:     (Cin, TH, W)          input row-band (n squeezed)
        # o_ref:     (Cout, 2TH, 2W)  f32  output band, already in final NCHW layout (n squeezed)
        acc = jnp.zeros((r2, w2), jnp.float32)
        for kw in range(2):                               # static, unrolled
            yk = jnp.zeros((r2, w_in), jnp.float32)
            for c in range(cin):                          # static, unrolled
                yk = yk + jnp.dot(b_ref[kw, c], x_ref[c],
                                  preferred_element_type=jnp.float32)   # (R2, W)
            acc = acc + jnp.dot(yk, s_ref[kw],
                                preferred_element_type=jnp.float32)     # (R2, 2W)
        z = acc + shift_ref[...]                          # BN shift (scale already folded into B)
        z = jnp.where(z >= 0, z, NEG_SLOPE * z)           # LeakyReLU
        # Leading-dim split only (minor dims untouched); single full-block store.
        o_ref[...] = z.reshape(cout, 2 * th, w2).astype(o_ref.dtype)

    return kernel


@functools.partial(jax.jit, static_argnames=("block_rows",))
def deconv_forward(x_nchw, weight, gamma, beta, *, block_rows=8):
    """x_nchw: (N, Cin, H, W); weight: (Cin, Cout, 2, 2); gamma/beta: (Cout,).

    Returns (N, Cout, 2H, 2W) float32, matching nn.Sequential(ConvTranspose2d(k=2, s=2,
    bias=False), BatchNorm2d (training-mode batch stats), LeakyReLU(0.01)).
    """
    n, cin, h, w_in = x_nchw.shape
    cout = weight.shape[1]
    m = n * h * w_in

    # Input row-band height: multiple of 8 (sublane tile) or the full H when H < 8.
    if h >= 8:
        th = max(8, (min(block_rows, h) // 8) * 8)
    else:
        th = h
    r2 = cout * 2 * th

    # ---- BatchNorm training-mode batch statistics, decoupled from the big pass. ----
    # Since stride == kernel == 2, per-channel mean/var reduce to Cin-sized quantities
    # (mean(x) and the centered Gram of x) -- stable two-pass formulation, HIGHEST precision.
    # TODO(synk): fold this reduction into a small Pallas kernel to drop the remaining extra
    # XLA passes over x (x is only ~1/9 of total HBM traffic, so kept in XLA for clarity).
    xf = x_nchw.astype(jnp.float32)
    wf = jnp.transpose(weight, (1, 2, 3, 0)).reshape(4 * cout, cin).astype(jnp.float32)
    xbar = jnp.mean(xf, axis=(0, 2, 3))                                      # (Cin,)
    xcent = xf - xbar[None, :, None, None]
    gc = jnp.einsum("ncij,ndij->cd", xcent, xcent,
                    precision=lax.Precision.HIGHEST)                         # (Cin, Cin)
    mean_rows = jnp.dot(wf, xbar, precision=lax.Precision.HIGHEST)           # (4*Cout,)
    mean_ch = jnp.mean(mean_rows.reshape(cout, 4), axis=1)                   # (Cout,)
    d = mean_rows - jnp.repeat(mean_ch, 4)
    q = jnp.einsum("rc,cd,rd->r", wf, gc, wf,
                   precision=lax.Precision.HIGHEST)                          # (4*Cout,)
    m_f = jnp.float32(m)
    var_ch = jnp.sum((q + m_f * d * d).reshape(cout, 4), axis=1) / (4.0 * m_f)

    scale_ch = gamma.astype(jnp.float32) * lax.rsqrt(var_ch + EPS)           # (Cout,)
    shift_ch = beta.astype(jnp.float32) - mean_ch * scale_ch                 # (Cout,)

    # ---- Structured constant operands (tiny; built once in XLA). ----
    ws = weight.astype(jnp.float32) * scale_ch[None, :, None, None]          # scale-folded weights
    eye_t = jnp.eye(th, dtype=jnp.float32)
    # B[kw, c, (co, t, kh), u] = ws[c, co, kh, kw] * I[t, u]  -> rows ordered (co, 2t+kh)
    b_mat = jnp.einsum("cohw,tu->wcothu", ws, eye_t).reshape(2, cin, r2, th)
    j_idx = jnp.arange(w_in)
    s_mat = jnp.zeros((2, w_in, 2 * w_in), jnp.float32)
    s_mat = s_mat.at[0, j_idx, 2 * j_idx].set(1.0)                           # column j -> lane 2j
    s_mat = s_mat.at[1, j_idx, 2 * j_idx + 1].set(1.0)                       # column j -> lane 2j+1
    shift_rows = jnp.repeat(shift_ch, 2 * th).reshape(r2, 1)

    # ---- Fused, pipelined main pass: one (Cin, TH, W) input band -> one (Cout, 2TH, 2W) NCHW band.
    grid = (n, pl.cdiv(h, th))
    kernel = _make_kernel(cin, cout, th, w_in)

    out = pl.pallas_call(
        kernel,
        out_shape=jax.ShapeDtypeStruct((n, cout, 2 * h, 2 * w_in), jnp.float32),
        grid=grid,
        in_specs=[
            pl.BlockSpec((2, cin, r2, th), lambda b, i: (0, 0, 0, 0)),        # B: resident
            pl.BlockSpec((2, w_in, 2 * w_in), lambda b, i: (0, 0, 0)),        # S: resident
            pl.BlockSpec((r2, 1), lambda b, i: (0, 0)),                       # shift: resident
            pl.BlockSpec((None, cin, th, w_in), lambda b, i: (b, 0, i, 0)),   # x band (pipelined)
        ],
        out_specs=pl.BlockSpec((None, cout, 2 * th, 2 * w_in),
                               lambda b, i: (b, 0, i, 0)),                    # final NCHW band
        compiler_params=pltpu.CompilerParams(
            dimension_semantics=("parallel", "parallel"),                     # v7x: 2 TensorCores
        ),
    )(b_mat, s_mat, shift_rows, x_nchw)

    return out


def _reference_forward(x_nchw, weight, gamma, beta):
    """Pure-JAX reference implementing the same semantics (for validation)."""
    n, cin, h, w = x_nchw.shape
    cout = weight.shape[1]
    # out[n, co, 2i+kh, 2j+kw] = sum_ci x[n, ci, i, j] * W[ci, co, kh, kw]
    y = jnp.einsum("ncij,cokl->noikjl", x_nchw.astype(jnp.float32),
                   weight.astype(jnp.float32), precision=lax.Precision.HIGHEST)
    y = y.reshape(n, cout, 2 * h, 2 * w)
    mean = jnp.mean(y, axis=(0, 2, 3), keepdims=True)
    var = jnp.mean((y - mean) ** 2, axis=(0, 2, 3), keepdims=True)
    yhat = (y - mean) * lax.rsqrt(var + EPS)
    z = yhat * gamma.reshape(1, cout, 1, 1) + beta.reshape(1, cout, 1, 1)
    return jnp.where(z >= 0, z, NEG_SLOPE * z)


if __name__ == "__main__":
    key = jax.random.PRNGKey(0)
    k_x, k_w, k_g, k_b = jax.random.split(key, 4)

    N, Cin, H, W = 2, 4, 16, 16
    Cout = 8

    x = jax.random.normal(k_x, (N, Cin, H, W), dtype=jnp.float32)
    weight = jax.random.normal(k_w, (Cin, Cout, 2, 2), dtype=jnp.float32) * 0.1
    gamma = 1.0 + 0.1 * jax.random.normal(k_g, (Cout,), dtype=jnp.float32)
    beta = 0.1 * jax.random.normal(k_b, (Cout,), dtype=jnp.float32)

    ref = _reference_forward(x, weight, gamma, beta)

    # block_rows=8 -> TH=8 -> grid (2, 2): exercises a multi-step pipelined 2-D grid.
    out = deconv_forward(x, weight, gamma, beta, block_rows=8)
    out = jax.block_until_ready(out)
    assert out.shape == (N, Cout, 2 * H, 2 * W), out.shape
    assert jnp.allclose(out, ref, atol=2e-4, rtol=2e-4), float(jnp.max(jnp.abs(out - ref)))

    print("KERNEL_OK")
</pallas_src>

<mosaic_0001>
module attributes {stable_mosaic.version = 11 : i64} {
  func.func @kernel(%arg0: i32, %arg1: i32, %arg2: memref<2x4x128x8xf32, #tpu.memory_space<vmem>>, %arg3: memref<2x16x32xf32, #tpu.memory_space<vmem>>, %arg4: memref<128x1xf32, #tpu.memory_space<vmem>>, %arg5: memref<1x4x8x16xf32, #tpu.memory_space<vmem>>, %arg6: memref<1x8x16x32xf32, #tpu.memory_space<vmem>>) attributes {dimension_semantics = [#tpu.dimension_semantics<parallel>, #tpu.dimension_semantics<parallel>], iteration_bounds = array<i64: 2, 2>, scalar_prefetch = 0 : i64, scratch_operands = 0 : i64, tpu.core_type = #tpu.core_type<tc>, window_params = [{pipeline_mode = #tpu.pipeline_mode<synchronous>, transform_indices = @transform_0, window_bounds = array<i64: 2, 4, 128, 8>}, {pipeline_mode = #tpu.pipeline_mode<synchronous>, transform_indices = @transform_1, window_bounds = array<i64: 2, 16, 32>}, {pipeline_mode = #tpu.pipeline_mode<synchronous>, transform_indices = @transform_2, window_bounds = array<i64: 128, 1>}, {transform_indices = @transform_3, window_bounds = array<i64: 1, 4, 8, 16>}, {transform_indices = @transform_4, window_bounds = array<i64: 1, 8, 16, 32>}]} {
    %cst = arith.constant 0.000000e+00 : f32
    %0 = vector.broadcast %cst : f32 to vector<128x32xf32>
    %cst_0 = arith.constant 0.000000e+00 : f32
    %1 = vector.broadcast %cst_0 : f32 to vector<128x16xf32>
    %c0 = arith.constant 0 : index
    %c0_1 = arith.constant 0 : index
    %c0_2 = arith.constant 0 : index
    %c0_3 = arith.constant 0 : index
    %2 = vector.load %arg2[%c0, %c0_1, %c0_2, %c0_3] : memref<2x4x128x8xf32, #tpu.memory_space<vmem>>, vector<1x1x128x8xf32>
    %3 = vector.shape_cast %2 : vector<1x1x128x8xf32> to vector<128x8xf32>
    %c0_4 = arith.constant 0 : index
    %c0_5 = arith.constant 0 : index
    %c0_6 = arith.constant 0 : index
    %c0_7 = arith.constant 0 : index
    %4 = vector.load %arg5[%c0_4, %c0_5, %c0_6, %c0_7] : memref<1x4x8x16xf32, #tpu.memory_space<vmem>>, vector<1x1x8x16xf32>
    %5 = vector.shape_cast %4 : vector<1x1x8x16xf32> to vector<8x16xf32>
    %cst_8 = arith.constant dense<0.000000e+00> : vector<128x16xf32>
    %6 = tpu.matmul %3, %5, %cst_8 {dimension_numbers = #tpu.dot_dimension_numbers<[1], [0], [0], [1], [0, 0, 1, 1], [], []>} : vector<128x8xf32>, vector<8x16xf32>, vector<128x16xf32> -> vector<128x16xf32>
    %7 = arith.addf %1, %6 : vector<128x16xf32>
    %c0_9 = arith.constant 0 : index
    %c1 = arith.constant 1 : index
    %c0_10 = arith.constant 0 : index
    %c0_11 = arith.constant 0 : index
    %8 = vector.load %arg2[%c0_9, %c1, %c0_10, %c0_11] : memref<2x4x128x8xf32, #tpu.memory_space<vmem>>, vector<1x1x128x8xf32>
    %9 = vector.shape_cast %8 : vector<1x1x128x8xf32> to vector<128x8xf32>
    %c0_12 = arith.constant 0 : index
    %c1_13 = arith.constant 1 : index
    %c0_14 = arith.constant 0 : index
    %c0_15 = arith.constant 0 : index
    %10 = vector.load %arg5[%c0_12, %c1_13, %c0_14, %c0_15] : memref<1x4x8x16xf32, #tpu.memory_space<vmem>>, vector<1x1x8x16xf32>
    %11 = vector.shape_cast %10 : vector<1x1x8x16xf32> to vector<8x16xf32>
    %cst_16 = arith.constant dense<0.000000e+00> : vector<128x16xf32>
    %12 = tpu.matmul %9, %11, %cst_16 {dimension_numbers = #tpu.dot_dimension_numbers<[1], [0], [0], [1], [0, 0, 1, 1], [], []>} : vector<128x8xf32>, vector<8x16xf32>, vector<128x16xf32> -> vector<128x16xf32>
    %13 = arith.addf %7, %12 : vector<128x16xf32>
    %c0_17 = arith.constant 0 : index
    %c2 = arith.constant 2 : index
    %c0_18 = arith.constant 0 : index
    %c0_19 = arith.constant 0 : index
    %14 = vector.load %arg2[%c0_17, %c2, %c0_18, %c0_19] : memref<2x4x128x8xf32, #tpu.memory_space<vmem>>, vector<1x1x128x8xf32>
    %15 = vector.shape_cast %14 : vector<1x1x128x8xf32> to vector<128x8xf32>
    %c0_20 = arith.constant 0 : index
    %c2_21 = arith.constant 2 : index
    %c0_22 = arith.constant 0 : index
    %c0_23 = arith.constant 0 : index
    %16 = vector.load %arg5[%c0_20, %c2_21, %c0_22, %c0_23] : memref<1x4x8x16xf32, #tpu.memory_space<vmem>>, vector<1x1x8x16xf32>
    %17 = vector.shape_cast %16 : vector<1x1x8x16xf32> to vector<8x16xf32>
    %cst_24 = arith.constant dense<0.000000e+00> : vector<128x16xf32>
    %18 = tpu.matmul %15, %17, %cst_24 {dimension_numbers = #tpu.dot_dimension_numbers<[1], [0], [0], [1], [0, 0, 1, 1], [], []>} : vector<128x8xf32>, vector<8x16xf32>, vector<128x16xf32> -> vector<128x16xf32>
    %19 = arith.addf %13, %18 : vector<128x16xf32>
    %c0_25 = arith.constant 0 : index
    %c3 = arith.constant 3 : index
    %c0_26 = arith.constant 0 : index
    %c0_27 = arith.constant 0 : index
    %20 = vector.load %arg2[%c0_25, %c3, %c0_26, %c0_27] : memref<2x4x128x8xf32, #tpu.memory_space<vmem>>, vector<1x1x128x8xf32>
    %21 = vector.shape_cast %20 : vector<1x1x128x8xf32> to vector<128x8xf32>
    %c0_28 = arith.constant 0 : index
    %c3_29 = arith.constant 3 : index
    %c0_30 = arith.constant 0 : index
    %c0_31 = arith.constant 0 : index
    %22 = vector.load %arg5[%c0_28, %c3_29, %c0_30, %c0_31] : memref<1x4x8x16xf32, #tpu.memory_space<vmem>>, vector<1x1x8x16xf32>
    %23 = vector.shape_cast %22 : vector<1x1x8x16xf32> to vector<8x16xf32>
    %cst_32 = arith.constant dense<0.000000e+00> : vector<128x16xf32>
    %24 = tpu.matmul %21, %23, %cst_32 {dimension_numbers = #tpu.dot_dimension_numbers<[1], [0], [0], [1], [0, 0, 1, 1], [], []>} : vector<128x8xf32>, vector<8x16xf32>, vector<128x16xf32> -> vector<128x16xf32>
    %25 = arith.addf %19, %24 : vector<128x16xf32>
    %c0_33 = arith.constant 0 : index
    %c0_34 = arith.constant 0 : index
    %c0_35 = arith.constant 0 : index
    %26 = vector.load %arg3[%c0_33, %c0_34, %c0_35] : memref<2x16x32xf32, #tpu.memory_space<vmem>>, vector<1x16x32xf32>
    %27 = vector.shape_cast %26 : vector<1x16x32xf32> to vector<16x32xf32>
    %cst_36 = arith.constant dense<0.000000e+00> : vector<128x32xf32>
    %28 = tpu.matmul %25, %27, %cst_36 {dimension_numbers = #tpu.dot_dimension_numbers<[1], [0], [0], [1], [0, 0, 1, 1], [], []>} : vector<128x16xf32>, vector<16x32xf32>, vector<128x32xf32> -> vector<128x32xf32>
    %29 = arith.addf %0, %28 : vector<128x32xf32>
    %cst_37 = arith.constant 0.000000e+00 : f32
    %30 = vector.broadcast %cst_37 : f32 to vector<128x16xf32>
    %c1_38 = arith.constant 1 : index
    %c0_39 = arith.constant 0 : index
    %c0_40 = arith.constant 0 : index
    %c0_41 = arith.constant 0 : index
    %31 = vector.load %arg2[%c1_38, %c0_39, %c0_40, %c0_41] : memref<2x4x128x8xf32, #tpu.memory_space<vmem>>, vector<1x1x128x8xf32>
    %32 = vector.shape_cast %31 : vector<1x1x128x8xf32> to vector<128x8xf32>
    %c0_42 = arith.constant 0 : index
    %c0_43 = arith.constant 0 : index
    %c0_44 = arith.constant 0 : index
    %c0_45 = arith.constant 0 : index
    %33 = vector.load %arg5[%c0_42, %c0_43, %c0_44, %c0_45] : memref<1x4x8x16xf32, #tpu.memory_space<vmem>>, vector<1x1x8x16xf32>
    %34 = vector.shape_cast %33 : vector<1x1x8x16xf32> to vector<8x16xf32>
    %cst_46 = arith.constant dense<0.000000e+00> : vector<128x16xf32>
    %35 = tpu.matmul %32, %34, %cst_46 {dimension_numbers = #tpu.dot_dimension_numbers<[1], [0], [0], [1], [0, 0, 1, 1], [], []>} : vector<128x8xf32>, vector<8x16xf32>, vector<128x16xf32> -> vector<128x16xf32>
    %36 = arith.addf %30, %35 : vector<128x16xf32>
    %c1_47 = arith.constant 1 : index
    %c1_48 = arith.constant 1 : index
    %c0_49 = arith.constant 0 : index
    %c0_50 = arith.constant 0 : index
    %37 = vector.load %arg2[%c1_47, %c1_48, %c0_49, %c0_50] : memref<2x4x128x8xf32, #tpu.memory_space<vmem>>, vector<1x1x128x8xf32>
    %38 = vector.shape_cast %37 : vector<1x1x128x8xf32> to vector<128x8xf32>
    %c0_51 = arith.constant 0 : index
    %c1_52 = arith.constant 1 : index
    %c0_53 = arith.constant 0 : index
    %c0_54 = arith.constant 0 : index
    %39 = vector.load %arg5[%c0_51, %c1_52, %c0_53, %c0_54] : memref<1x4x8x16xf32, #tpu.memory_space<vmem>>, vector<1x1x8x16xf32>
    %40 = vector.shape_cast %39 : vector<1x1x8x16xf32> to vector<8x16xf32>
    %cst_55 = arith.constant dense<0.000000e+00> : vector<128x16xf32>
    %41 = tpu.matmul %38, %40, %cst_55 {dimension_numbers = #tpu.dot_dimension_numbers<[1], [0], [0], [1], [0, 0, 1, 1], [], []>} : vector<128x8xf32>, vector<8x16xf32>, vector<128x16xf32> -> vector<128x16xf32>
    %42 = arith.addf %36, %41 : vector<128x16xf32>
    %c1_56 = arith.constant 1 : index
    %c2_57 = arith.constant 2 : index
    %c0_58 = arith.constant 0 : index
    %c0_59 = arith.constant 0 : index
    %43 = vector.load %arg2[%c1_56, %c2_57, %c0_58, %c0_59] : memref<2x4x128x8xf32, #tpu.memory_space<vmem>>, vector<1x1x128x8xf32>
    %44 = vector.shape_cast %43 : vector<1x1x128x8xf32> to vector<128x8xf32>
    %c0_60 = arith.constant 0 : index
    %c2_61 = arith.constant 2 : index
    %c0_62 = arith.constant 0 : index
    %c0_63 = arith.constant 0 : index
    %45 = vector.load %arg5[%c0_60, %c2_61, %c0_62, %c0_63] : memref<1x4x8x16xf32, #tpu.memory_space<vmem>>, vector<1x1x8x16xf32>
    %46 = vector.shape_cast %45 : vector<1x1x8x16xf32> to vector<8x16xf32>
    %cst_64 = arith.constant dense<0.000000e+00> : vector<128x16xf32>
    %47 = tpu.matmul %44, %46, %cst_64 {dimension_numbers = #tpu.dot_dimension_numbers<[1], [0], [0], [1], [0, 0, 1, 1], [], []>} : vector<128x8xf32>, vector<8x16xf32>, vector<128x16xf32> -> vector<128x16xf32>
    %48 = arith.addf %42, %47 : vector<128x16xf32>
    %c1_65 = arith.constant 1 : index
    %c3_66 = arith.constant 3 : index
    %c0_67 = arith.constant 0 : index
    %c0_68 = arith.constant 0 : index
    %49 = vector.load %arg2[%c1_65, %c3_66, %c0_67, %c0_68] : memref<2x4x128x8xf32, #tpu.memory_space<vmem>>, vector<1x1x128x8xf32>
    %50 = vector.shape_cast %49 : vector<1x1x128x8xf32> to vector<128x8xf32>
    %c0_69 = arith.constant 0 : index
    %c3_70 = arith.constant 3 : index
    %c0_71 = arith.constant 0 : index
    %c0_72 = arith.constant 0 : index
    %51 = vector.load %arg5[%c0_69, %c3_70, %c0_71, %c0_72] : memref<1x4x8x16xf32, #tpu.memory_space<vmem>>, vector<1x1x8x16xf32>
    %52 = vector.shape_cast %51 : vector<1x1x8x16xf32> to vector<8x16xf32>
    %cst_73 = arith.constant dense<0.000000e+00> : vector<128x16xf32>
    %53 = tpu.matmul %50, %52, %cst_73 {dimension_numbers = #tpu.dot_dimension_numbers<[1], [0], [0], [1], [0, 0, 1, 1], [], []>} : vector<128x8xf32>, vector<8x16xf32>, vector<128x16xf32> -> vector<128x16xf32>
    %54 = arith.addf %48, %53 : vector<128x16xf32>
    %c1_74 = arith.constant 1 : index
    %c0_75 = arith.constant 0 : index
    %c0_76 = arith.constant 0 : index
    %55 = vector.load %arg3[%c1_74, %c0_75, %c0_76] : memref<2x16x32xf32, #tpu.memory_space<vmem>>, vector<1x16x32xf32>
    %56 = vector.shape_cast %55 : vector<1x16x32xf32> to vector<16x32xf32>
    %cst_77 = arith.constant dense<0.000000e+00> : vector<128x32xf32>
    %57 = tpu.matmul %54, %56, %cst_77 {dimension_numbers = #tpu.dot_dimension_numbers<[1], [0], [0], [1], [0, 0, 1, 1], [], []>} : vector<128x16xf32>, vector<16x32xf32>, vector<128x32xf32> -> vector<128x32xf32>
    %58 = arith.addf %29, %57 : vector<128x32xf32>
    %c0_78 = arith.constant 0 : index
    %c0_79 = arith.constant 0 : index
    %59 = vector.load %arg4[%c0_78, %c0_79] : memref<128x1xf32, #tpu.memory_space<vmem>>, vector<128x1xf32>
    %60 = vector.broadcast %59 : vector<128x1xf32> to vector<128x32xf32>
    %61 = arith.addf %58, %60 : vector<128x32xf32>
    %cst_80 = arith.constant 0.000000e+00 : f32
    %62 = vector.broadcast %cst_80 : f32 to vector<128x32xf32>
    %63 = arith.cmpf oge, %61, %62 : vector<128x32xf32>
    %cst_81 = arith.constant 0.00999999977 : f32
    %64 = vector.broadcast %cst_81 : f32 to vector<128x32xf32>
    %65 = arith.mulf %64, %61 : vector<128x32xf32>
    %66 = arith.select %63, %61, %65 : vector<128x32xi1>, vector<128x32xf32>
    %67 = vector.shape_cast %66 : vector<128x32xf32> to vector<8x16x32xf32>
    %c0_82 = arith.constant 0 : index
    %c0_83 = arith.constant 0 : index
    %c0_84 = arith.constant 0 : index
    %c0_85 = arith.constant 0 : index
    %68 = vector.load %arg6[%c0_82, %c0_83, %c0_84, %c0_85] : memref<1x8x16x32xf32, #tpu.memory_space<vmem>>, vector<1x8x16x32xf32>
    %69 = vector.shape_cast %68 : vector<1x8x16x32xf32> to vector<8x16x32xf32>
    %70 = vector.shape_cast %67 : vector<8x16x32xf32> to vector<1x8x16x32xf32>
    tpu.vector_store %arg6[%c0_82, %c0_83, %c0_84, %c0_85], %70 {strides = array<i32>} : memref<1x8x16x32xf32, #tpu.memory_space<vmem>>, vector<1x8x16x32xf32>,
    return
  }
  func.func @transform_0(%arg0: i32, %arg1: i32) -> (i32, i32, i32, i32) {
    %c0_i32 = arith.constant 0 : i32
    %c0_i32_0 = arith.constant 0 : i32
    %c0_i32_1 = arith.constant 0 : i32
    %c0_i32_2 = arith.constant 0 : i32
    %c0_i32_3 = arith.constant 0 : i32
    return %c0_i32, %c0_i32_0, %c0_i32_1, %c0_i32_2 : i32, i32, i32, i32
  }
  func.func @transform_1(%arg0: i32, %arg1: i32) -> (i32, i32, i32) {
    %c0_i32 = arith.constant 0 : i32
    %c0_i32_0 = arith.constant 0 : i32
    %c0_i32_1 = arith.constant 0 : i32
    %c0_i32_2 = arith.constant 0 : i32
    return %c0_i32, %c0_i32_0, %c0_i32_1 : i32, i32, i32
  }
  func.func @transform_2(%arg0: i32, %arg1: i32) -> (i32, i32) {
    %c0_i32 = arith.constant 0 : i32
    %c0_i32_0 = arith.constant 0 : i32
    %c0_i32_1 = arith.constant 0 : i32
    return %c0_i32, %c0_i32_0 : i32, i32
  }
  func.func @transform_3(%arg0: i32, %arg1: i32) -> (i32, i32, i32, i32) {
    %c0_i32 = arith.constant 0 : i32
    %c0_i32_0 = arith.constant 0 : i32
    %c0_i32_1 = arith.constant 0 : i32
    return %arg0, %c0_i32, %arg1, %c0_i32_0 : i32, i32, i32, i32
  }
  func.func @transform_4(%arg0: i32, %arg1: i32) -> (i32, i32, i32, i32) {
    %c0_i32 = arith.constant 0 : i32
    %c0_i32_0 = arith.constant 0 : i32
    %c0_i32_1 = arith.constant 0 : i32
    return %arg0, %c0_i32, %arg1, %c0_i32_0 : i32, i32, i32, i32
  }
}

</mosaic_0001>

<llo_original>
// kernel: deconv_forward.1
$region0: #{deconv_forward.1}
  #allocation0 [shape = 'u32[]', space=smem, size = 0x4, offset = 0x4, fixed_abs, tag = 'smem constant byte address 0x4 - core index']
  #allocation1 [shape = 'u32[144,128]{1,0:T(1,128)}', space=vmem, size = 0x12000, scoped, tag = 'internal scratch']
  #allocation5 [shape = 's32[]', space=sflag, size = 0x4, offset = 0, fixed_abs, tag = 'sflag constant byte address 0x0 - dummy sync flag']
  %s0 = inlined_call_operand.vmem [shape: f32[2,4,128,8], index: 0, kind: input, shape index: {}]
  %s1 = inlined_call_operand.vmem [shape: f32[2,16,32], index: 1, kind: input, shape index: {}]
  %s2 = inlined_call_operand.vmem [shape: f32[128,1], index: 2, kind: input, shape index: {}]
  %s3 = inlined_call_operand.vmem [shape: f32[2,4,16,16], index: 3, kind: input, shape index: {}]
  %s4 = inlined_call_operand.hbm [shape: f32[2,8,32,32], index: 4, kind: output, shape index: {}]
  %s5 = sld [smem:[#allocation0]]
  $region87: #{deconv_forward.1} parent=0
    _
  %s7 = ssub.s32 1, %s5
  %s8 = scalar_select 0, %s7, %s5
  $region1: #{deconv_forward.1} parent=0
    #allocation2 [shape = 'u8[32768]{0}', space=vmem, size = 0x8000, scoped, tag = 'input window, operand 3']
    #allocation3 [shape = 'u8[131072]{0}', space=vmem, size = 0x20000, scoped, tag = 'output window, operand 0']
    #allocation4 [shape = 's32[2]{0}', space=sflag, size = 0x8, scoped, tag = 'scoped memory for deconv_forward.1']
    %9 = vsyncpa [#allocation4], 0
    %s10 = scalar_lea.sflag [#allocation4], 1
    %11 = vsyncpa %s10, 0
    loop: start=0, step=1, limit=6
    $region2: #{deconv_forward.1} parent=1 // loop_pre_header
      _
    $region3: #{deconv_forward.1} parent=1 // loop_header
      %s13 = sphi 0, %s17
      %p14 = scmp.ge.s32.totalorder %s13, 6
      %s20 = sphi 0, %s32
      %s21 = sphi 0, %s28
      %s22 = sphi 0, %s20
      %s23 = sphi 0, %s21
      %s24 = sphi 0, %s22
      %s25 = sphi 0, %s23
      %s33 = sphi 0, %s33
      %s35 = sphi 0, %s33
      %s36 = sphi 0, %s35
      %s50 = sphi 0, %s36
      %s54 = sphi 0, %s54
      %s56 = sphi 0, %s54
      %s57 = sphi 0, %s56
      %s71 = sphi 0, %s57
      %s75 = sphi 0, %s75
      %s77 = sphi 0, %s75
      %s78 = sphi 0, %s77
      %s92 = sphi 0, %s78
      %s100 = sphi 0, %s102
      %s103 = sphi 0, %s100
      %s104 = sphi 0, %s103
      %s120 = sphi 0, %s104
      %s128 = sphi 0, %s130
      %s131 = sphi 0, %s128
      %s132 = sphi 0, %s131
      %s148 = sphi 0, %s132
    $region4: #{deconv_forward.1} parent=1 // loop_header_branch
      %16 = sbr.rel (%p14) target = $region8
    $region5: #{deconv_forward.1} parent=1 // loop_body
      %s18 = ssub.s32 %s13, 1
      %s19 = ssub.s32 %s13, 2
      %s26 = sadd.s32 1, %s21
      %p27 = scmp.ge.s32.totalorder %s26, 2
      %s28 = scalar_select %p27, 0, %s26
      %s29 = sadd.s32 1, %s20
      %s30 = scalar_select %p27, %s29, %s20
      %p31 = scmp.ge.s32.totalorder %s30, 2
      %s32 = scalar_select %p31, 0, %s30
      %s34 = sadd.s32 %s33, 1
      %p37 = scmp.eq.s32.totalorder %s13, 3
      %p38 = scmp.ne.s32.totalorder %s33, %s35
      %p39 = scmp.eq.s32.totalorder %s13, 0
      %p40 = por %p38, %p39
      %p41 = scmp.ne.s32.totalorder %s33, %s35
      %p42 = scmp.eq.s32.totalorder %s18, 3
      %p43 = por %p41, %p42
      %p44 = scmp.ne.s32.totalorder %s35, %s36
      %p45 = scmp.eq.s32.totalorder %s18, 0
      %p46 = por %p44, %p45
      %p47 = scmp.ne.s32.totalorder %s35, %s36
      %p48 = scmp.eq.s32.totalorder %s19, 3
      %p49 = por %p47, %p48
      %p51 = scmp.ne.s32.totalorder %s36, %s50
      %p52 = scmp.eq.s32.totalorder %s19, 0
      %p53 = por %p51, %p52
      %s55 = sadd.s32 %s54, 1
      %p58 = scmp.eq.s32.totalorder %s13, 3
      %p59 = scmp.ne.s32.totalorder %s54, %s56
      %p60 = scmp.eq.s32.totalorder %s13, 0
      %p61 = por %p59, %p60
      %p62 = scmp.ne.s32.totalorder %s54, %s56
      %p63 = scmp.eq.s32.totalorder %s18, 3
      %p64 = por %p62, %p63
      %p65 = scmp.ne.s32.totalorder %s56, %s57
      %p66 = scmp.eq.s32.totalorder %s18, 0
      %p67 = por %p65, %p66
      %p68 = scmp.ne.s32.totalorder %s56, %s57
      %p69 = scmp.eq.s32.totalorder %s19, 3
      %p70 = por %p68, %p69
      %p72 = scmp.ne.s32.totalorder %s57, %s71
      %p73 = scmp.eq.s32.totalorder %s19, 0
      %p74 = por %p72, %p73
      %s76 = sadd.s32 %s75, 1
      %p79 = scmp.eq.s32.totalorder %s13, 3
      %p80 = scmp.ne.s32.totalorder %s75, %s77
      %p81 = scmp.eq.s32.totalorder %s13, 0
      %p82 = por %p80, %p81
      %p83 = scmp.ne.s32.totalorder %s75, %s77
      %p84 = scmp.eq.s32.totalorder %s18, 3
      %p85 = por %p83, %p84
      %p86 = scmp.ne.s32.totalorder %s77, %s78
      %p87 = scmp.eq.s32.totalorder %s18, 0
      %p88 = por %p86, %p87
      %p89 = scmp.ne.s32.totalorder %s77, %s78
      %p90 = scmp.eq.s32.totalorder %s19, 3
      %p91 = por %p89, %p90
      %p93 = scmp.ne.s32.totalorder %s78, %s92
      %p94 = scmp.eq.s32.totalorder %s19, 0
      %p95 = por %p93, %p94
      %s96 = ssub.s32 %s20, %s32
      %s97 = ssub.s32 %s21, %s28
      %s98 = sor.u32 %s96, %s97
      %p99 = scmp.eq.s32.totalorder %s98, 0
      %s101 = sadd.s32 %s100, 1
      %s102 = scalar_select %p99, %s100, %s101
      %p105 = pneg %p99
      %p106 = scmp.eq.s32.totalorder %s13, 3
      %p107 = por %p105, %p106
      %p108 = scmp.ne.s32.totalorder %s100, %s103
      %p109 = scmp.eq.s32.totalorder %s13, 0
      %p110 = por %p108, %p109
      %p111 = scmp.ne.s32.totalorder %s100, %s103
      %p112 = scmp.eq.s32.totalorder %s18, 3
      %p113 = por %p111, %p112
      %p114 = scmp.ne.s32.totalorder %s103, %s104
      %p115 = scmp.eq.s32.totalorder %s18, 0
      %p116 = por %p114, %p115
      %p117 = scmp.ne.s32.totalorder %s103, %s104
      %p118 = scmp.eq.s32.totalorder %s19, 3
      %p119 = por %p117, %p118
      %p121 = scmp.ne.s32.totalorder %s104, %s120
      %p122 = scmp.eq.s32.totalorder %s19, 0
      %p123 = por %p121, %p122
      %s124 = ssub.s32 %s20, %s32
      %s125 = ssub.s32 %s21, %s28
      %s126 = sor.u32 %s124, %s125
      %p127 = scmp.eq.s32.totalorder %s126, 0
      %s129 = sadd.s32 %s128, 1
      %s130 = scalar_select %p127, %s128, %s129
      %p133 = pneg %p127
      %p134 = scmp.eq.s32.totalorder %s13, 3
      %p135 = por %p133, %p134
      %p136 = scmp.ne.s32.totalorder %s128, %s131
      %p137 = scmp.eq.s32.totalorder %s13, 0
      %p138 = por %p136, %p137
      %p139 = scmp.ne.s32.totalorder %s128, %s131
      %p140 = scmp.eq.s32.totalorder %s18, 3
      %p141 = por %p139, %p140
      %p142 = scmp.ne.s32.totalorder %s131, %s132
      %p143 = scmp.eq.s32.totalorder %s18, 0
      %p144 = por %p142, %p143
      %p145 = scmp.ne.s32.totalorder %s131, %s132
      %p146 = scmp.eq.s32.totalorder %s19, 3
      %p147 = por %p145, %p146
      %p149 = scmp.ne.s32.totalorder %s132, %s148
      %p150 = scmp.eq.s32.totalorder %s19, 0
      %p151 = por %p149, %p150
      %p152 = scmp.le.s32.totalorder 1, %s13
      %p153 = scmp.lt.s32.totalorder %s13, 5
      %p154 = pnand %p152, %p153
      %p155 = pneg %p154
      // Predicated region
      $region9: #{deconv_forward.1} parent=5 // pred_check
        _
      $region10: #{deconv_forward.1} parent=5 // pred_check_branch
        %157 = sbr.rel (%p154) target = $region12
      $region11: #{deconv_forward.1} parent=5 // pred_region
        %s158 = ssub.s32 %s13, 1
        // Predicated region
        $region13: #{deconv_forward.1} parent=11 // pred_check
          %p159 = pneg %p46
        $region14: #{deconv_forward.1} parent=11 // pred_check_branch
          %161 = sbr.rel (%p159) target = $region16
        $region15: #{deconv_forward.1} parent=11 // pred_region
          _
        $region16: #{deconv_forward.1} parent=11 // pred_fallthru
          _
        // Predicated region
        $region17: #{deconv_forward.1} parent=11 // pred_check
          %p162 = pneg %p67
        $region18: #{deconv_forward.1} parent=11 // pred_check_branch
          %164 = sbr.rel (%p162) target = $region20
        $region19: #{deconv_forward.1} parent=11 // pred_region
          _
        $region20: #{deconv_forward.1} parent=11 // pred_fallthru
          _
        // Predicated region
        $region21: #{deconv_forward.1} parent=11 // pred_check
          %p165 = pneg %p88
        $region22: #{deconv_forward.1} parent=11 // pred_check_branch
          %167 = sbr.rel (%p165) target = $region24
        $region23: #{deconv_forward.1} parent=11 // pred_region
          _
        $region24: #{deconv_forward.1} parent=11 // pred_fallthru
          _
      $region12: #{deconv_forward.1} parent=5 // pred_fallthru
        _
      %p168 = scmp.lt.s32.totalorder %s13, 4
      // Predicated region
      $region25: #{deconv_forward.1} parent=5 // pred_check
        %p169 = pneg %p168
      $region26: #{deconv_forward.1} parent=5 // pred_check_branch
        %171 = sbr.rel (%p169) target = $region28
      $region27: #{deconv_forward.1} parent=5 // pred_region
        // Predicated region
        $region29: #{deconv_forward.1} parent=27 // pred_check
          %p172 = pneg %p110
        $region30: #{deconv_forward.1} parent=27 // pred_check_branch
          %174 = sbr.rel (%p172) target = $region32
        $region31: #{deconv_forward.1} parent=27 // pred_region
          %s175 = sand.u32 %s100, 1
          %s176 = sand.u32 %s100, 1
          %s177 = smul.addr %s176, 32
          %s178 = scalar_lea.vmem [#allocation2], %s177
          %s179 = smul.addr %s20, 8
          %s180 = sadd.s32 %s21, %s179
          %s181 = smul.addr %s180, 8
          %s182 = scalar_lea.vmem %s3, %s181
          // Predicated region
          $region33: #{deconv_forward.1} parent=31 // pred_check
            _
          $region34: #{deconv_forward.1} parent=31 // pred_check_branch
            %184 = sbr.rel (0) target = $region36
          $region35: #{deconv_forward.1} parent=31 // pred_region
            // Predicated region
            $region37: #{deconv_forward.1} parent=35 // pred_check
              _
            $region38: #{deconv_forward.1} parent=35 // pred_check_branch
              %186 = sbr.rel (0) target = $region40
            $region39: #{deconv_forward.1} parent=35 // pred_region
              // Predicated region
              $region52: #{deconv_forward.1} parent=39 // pred_check
                _
              $region53: #{deconv_forward.1} parent=39 // pred_check_branch
                %207 = sbr.rel (0) target = $region55
              $region54: #{deconv_forward.1} parent=39 // pred_region
                loop: start=0, step=1, limit=1
                $region56: #{deconv_forward.1} parent=54 // loop_pre_header
                  _
                $region57: #{deconv_forward.1} parent=54 // loop_header
                  %s209 = sphi 0, %s213
                  %p210 = scmp.ge.s32.totalorder %s209, 1
                  %s214 = sphi %s182, %s182
                  %s215 = sphi %s178, %s178
                $region58: #{deconv_forward.1} parent=54 // loop_header_branch
                  %212 = sbr.rel (%p210) target = $region62
                $region59: #{deconv_forward.1} parent=54 // loop_body
                  %v216 = vld [vmem:[%s214] sm:$0xff]
                  %217 = vst [vmem:[%s215] sm:$0xff] %v216
                  %v218 = vld [vmem:[%s214 + $0x10] sm:$0xff]
                  %219 = vst [vmem:[%s215 + $0x8] sm:$0xff] %v218
                  %v220 = vld [vmem:[%s214 + $0x20] sm:$0xff]
                  %221 = vst [vmem:[%s215 + $0x10] sm:$0xff] %v220
                  %v222 = vld [vmem:[%s214 + $0x30] sm:$0xff]
                  %223 = vst [vmem:[%s215 + $0x18] sm:$0xff] %v222
                $region60: #{deconv_forward.1} parent=54 // loop_footer
                  %s213 = sadd.s32 1, %s209
                $region61: #{deconv_forward.1} parent=54 // loop_footer_branch
                  %208 = sbr.rel target = $region57
                $region62: #{deconv_forward.1} parent=54 // loop_exit
                  _
              $region55: #{deconv_forward.1} parent=39 // pred_fallthru
                _
              // Predicated region
              $region63: #{deconv_forward.1} parent=39 // pred_check
                _
              $region64: #{deconv_forward.1} parent=39 // pred_check_branch
                %225 = sbr.rel target = $region66
              $region65: #{deconv_forward.1} parent=39 // pred_region
                _
              $region66: #{deconv_forward.1} parent=39 // pred_fallthru
                _
            $region40: #{deconv_forward.1} parent=35 // pred_fallthru
              _
            // Predicated region
            $region41: #{deconv_forward.1} parent=35 // pred_check
              _
            $region42: #{deconv_forward.1} parent=35 // pred_check_branch
              %188 = sbr.rel target = $region44
            $region43: #{deconv_forward.1} parent=35 // pred_region
              loop: start=0, step=1, limit=1
              $region45: #{deconv_forward.1} parent=43 // loop_pre_header
                _
              $region46: #{deconv_forward.1} parent=43 // loop_header
                %s191 = sphi 0, %s195
                %p192 = scmp.ge.s32.totalorder %s191, 1
                %s196 = sphi %s182, %s182
                %s197 = sphi %s178, %s178
              $region47: #{deconv_forward.1} parent=43 // loop_header_branch
                %194 = sbr.rel (%p192) target = $region51
              $region48: #{deconv_forward.1} parent=43 // loop_body
                %v198 = vld [vmem:[%s196] sm:$0xff]
                %199 = vst [vmem:[%s197] sm:$0xff] %v198
                %v200 = vld [vmem:[%s196 + $0x10] sm:$0xff]
                %201 = vst [vmem:[%s197 + $0x8] sm:$0xff] %v200
                %v202 = vld [vmem:[%s196 + $0x20] sm:$0xff]
                %203 = vst [vmem:[%s197 + $0x10] sm:$0xff] %v202
                %v204 = vld [vmem:[%s196 + $0x30] sm:$0xff]
                %205 = vst [vmem:[%s197 + $0x18] sm:$0xff] %v204
              $region49: #{deconv_forward.1} parent=43 // loop_footer
                %s195 = sadd.s32 1, %s191
              $region50: #{deconv_forward.1} parent=43 // loop_footer_branch
                %190 = sbr.rel target = $region46
              $region51: #{deconv_forward.1} parent=43 // loop_exit
                _
            $region44: #{deconv_forward.1} parent=35 // pred_fallthru
              _
          $region36: #{deconv_forward.1} parent=31 // pred_fallthru
            _
          %226 = vnop
        $region32: #{deconv_forward.1} parent=27 // pred_fallthru
          _
      $region28: #{deconv_forward.1} parent=5 // pred_fallthru
        _
      %p227 = scmp.le.s32.totalorder 1, %s13
      %p228 = scmp.lt.s32.totalorder %s13, 5
      %p229 = pnand %p227, %p228
      %p230 = pneg %p229
      // Predicated region
      $region67: #{deconv_forward.1} parent=5 // pred_check
        _
      $region68: #{deconv_forward.1} parent=5 // pred_check_branch
        %232 = sbr.rel (%p229) target = $region70
      $region69: #{deconv_forward.1} parent=5 // pred_region
        %s233 = ssub.s32 %s13, 1
        %s234 = sand.u32 %s103, 1
        %s235 = sand.u32 %s103, 1
        %s236 = smul.addr %s235, 32
        %s237 = scalar_lea.vmem [#allocation2], %s236
        // Predicated region
        $region71: #{deconv_forward.1} parent=69 // pred_check
          %p238 = pneg %p116
        $region72: #{deconv_forward.1} parent=69 // pred_check_branch
          %240 = sbr.rel (%p238) target = $region74
        $region73: #{deconv_forward.1} parent=69 // pred_region
          _
        $region74: #{deconv_forward.1} parent=69 // pred_fallthru
          _
        %p241 = pneg %p46
        %p242 = pneg %p43
        %p243 = pneg %p67
        %p244 = pneg %p64
        %p245 = pneg %p88
        %p246 = pneg %p85
        %s247 = sand.u32 %s103, 1
        %s248 = sand.u32 %s103, 1
        %s249 = smul.addr %s248, 32
        %s250 = scalar_lea.vmem [#allocation2], %s249
        %p251 = pneg %p116
        %p252 = pneg %p113
        %p253 = pneg %p144
        %p254 = pneg %p141
        %s255 = sand.u32 %s131, 1
        %s256 = scalar_lea.sflag [#allocation4], %s255
        %s257 = sand.u32 %s131, 1
        %s258 = smul.addr %s257, 128
        %s259 = scalar_lea.vmem [#allocation3], %s258
        %s260 = smul.u32 2, %s23
        %v261 = vld [vmem:[%s0] sm:$0xff]
        %v262 = vld [vmem:[%s0 + $0x8] sm:$0xff]
        %v263 = vld [vmem:[%s0 + $0x10] sm:$0xff]
        %v264 = vld [vmem:[%s0 + $0x18] sm:$0xff]
        %v265 = vld [vmem:[%s0 + $0x20] sm:$0xff]
        %v266 = vld [vmem:[%s0 + $0x28] sm:$0xff]
        %v267 = vld [vmem:[%s0 + $0x30] sm:$0xff]
        %v268 = vld [vmem:[%s0 + $0x38] sm:$0xff]
        %v269 = vld [vmem:[%s0 + $0x40] sm:$0xff]
        %v270 = vld [vmem:[%s0 + $0x48] sm:$0xff]
        %v271 = vld [vmem:[%s0 + $0x50] sm:$0xff]
        %v272 = vld [vmem:[%s0 + $0x58] sm:$0xff]
        %v273 = vld [vmem:[%s0 + $0x60] sm:$0xff]
        %v274 = vld [vmem:[%s0 + $0x68] sm:$0xff]
        %v275 = vld [vmem:[%s0 + $0x70] sm:$0xff]
        %v276 = vld [vmem:[%s0 + $0x78] sm:$0xff]
        %v277 = vld [vmem:[%s237] sm:$0xff]
        %s278 = scalar_lea.vmem %s0, 128
        %v279 = vld [vmem:[%s278] sm:$0xff]
        %v280 = vld [vmem:[%s278 + $0x8] sm:$0xff]
        %v281 = vld [vmem:[%s278 + $0x10] sm:$0xff]
        %v282 = vld [vmem:[%s278 + $0x18] sm:$0xff]
        %v283 = vld [vmem:[%s278 + $0x20] sm:$0xff]
        %v284 = vld [vmem:[%s278 + $0x28] sm:$0xff]
        %v285 = vld [vmem:[%s278 + $0x30] sm:$0xff]
        %v286 = vld [vmem:[%s278 + $0x38] sm:$0xff]
        %v287 = vld [vmem:[%s278 + $0x40] sm:$0xff]
        %v288 = vld [vmem:[%s278 + $0x48] sm:$0xff]
        %v289 = vld [vmem:[%s278 + $0x50] sm:$0xff]
        %v290 = vld [vmem:[%s278 + $0x58] sm:$0xff]
        %v291 = vld [vmem:[%s278 + $0x60] sm:$0xff]
        %v292 = vld [vmem:[%s278 + $0x68] sm:$0xff]
        %v293 = vld [vmem:[%s278 + $0x70] sm:$0xff]
        %v294 = vld [vmem:[%s278 + $0x78] sm:$0xff]
        %s295 = scalar_lea.vmem %s237, 8 [#allocation2]
        %v296 = vld [vmem:[%s295] sm:$0xff]
        %vm297 = vcmask 64512
        %v299 = vsel %vm297, %v279, 0
        %v302 = vsel %vm297, %v280, 0
        %v305 = vsel %vm297, %v281, 0
        %v308 = vsel %vm297, %v282, 0
        %v311 = vsel %vm297, %v283, 0
        %v314 = vsel %vm297, %v284, 0
        %v317 = vsel %vm297, %v285, 0
        %v320 = vsel %vm297, %v286, 0
        %v323 = vsel %vm297, %v287, 0
        %v326 = vsel %vm297, %v288, 0
        %v329 = vsel %vm297, %v289, 0
        %v332 = vsel %vm297, %v290, 0
        %v335 = vsel %vm297, %v291, 0
        %v338 = vsel %vm297, %v292, 0
        %v341 = vsel %vm297, %v293, 0
        %v344 = vsel %vm297, %v294, 0
        %346 = vmatprep.subr.mxu0 0.0
        %347 = vmatpush1.msra.mxu0 %v296
        %348 = vmatprep.subr.mxu0 0.0
        %349 = vmatpush1.msra.mxu0 0.0
        %350 = vmatprep.subr.mxu0 0.0
        %351 = vmatpush1.msra.mxu0 0.0
        %352 = vmatprep.subr.mxu0 0.0
        %353 = vmatpush1.msra.mxu0 0.0
        %354 = vmatprep.subr.mxu0 0.0
        %355 = vmatpush1.msra.mxu0 0.0
        %356 = vmatprep.subr.mxu0 0.0
        %357 = vmatpush1.msra.mxu0 0.0
        %358 = vmatprep.subr.mxu0 0.0
        %359 = vmatpush1.msra.mxu0 0.0
        %360 = vmatprep.subr.mxu0 0.0
        %361 = vmatpush1.msra.mxu0 0.0
        %362 = vmatprep.subr.mxu0 0.0
        %363 = vmatpush1.msra.mxu0 0.0
        %364 = vmatprep.subr.mxu0 0.0
        %365 = vmatpush1.msra.mxu0 0.0
        %366 = vmatprep.subr.mxu0 0.0
        %367 = vmatpush1.msra.mxu0 0.0
        %368 = vmatprep.subr.mxu0 0.0
        %369 = vmatpush1.msra.mxu0 0.0
        %370 = vmatprep.subr.mxu0 0.0
        %371 = vmatpush1.msra.mxu0 0.0
        %372 = vmatprep.subr.mxu0 0.0
        %373 = vmatpush1.msra.mxu0 0.0
        %374 = vmatprep.subr.mxu0 0.0
        %375 = vmatpush1.msra.mxu0 0.0
        %376 = vmatprep.subr.mxu0 0.0
        %377 = vmatpush1.msra.mxu0 0.0
        %378 = vmatprep.subr.mxu0 0.0
        %379 = vmatpush1.msra.mxu0 0.0
        %380 = vmatprep.subr.mxu0 0.0
        %381 = vmatpush1.msra.mxu0 0.0
        %382 = vmatprep.subr.mxu0 0.0
        %383 = vmatpush1.msra.mxu0 0.0
        %384 = vmatprep.subr.mxu0 0.0
        %385 = vmatpush1.msra.mxu0 0.0
        %386 = vmatprep.subr.mxu0 0.0
        %387 = vmatpush1.msra.mxu0 0.0
        %388 = vmatprep.subr.mxu0 0.0
        %389 = vmatpush1.msra.mxu0 0.0
        %390 = vmatprep.subr.mxu0 0.0
        %391 = vmatpush1.msra.mxu0 0.0
        %392 = vmatprep.subr.mxu0 0.0
        %393 = vmatpush1.msra.mxu0 0.0
        %394 = vmatprep.subr.mxu0 0.0
        %395 = vmatpush1.msra.mxu0 0.0
        %396 = vmatprep.subr.mxu0 0.0
        %397 = vmatpush1.msra.mxu0 0.0
        %398 = vmatprep.subr.mxu0 0.0
        %399 = vmatpush1.msra.mxu0 0.0
        %400 = vmatprep.subr.mxu0 0.0
        %401 = vmatpush1.msra.mxu0 0.0
        %402 = vmatprep.subr.mxu0 0.0
        %403 = vmatpush1.msra.mxu0 0.0
        %404 = vmatprep.subr.mxu0 0.0
        %405 = vmatpush1.msra.mxu0 0.0
        %406 = vmatprep.subr.mxu0 0.0
        %407 = vmatpush1.msra.mxu0 0.0
        %408 = vmatprep.subr.mxu0 0.0
        %409 = vmatpush1.msra.mxu0 0.0
        %410 = vmatprep.mubr.f32.mxu0 0.0
        %411 = vmatmul.mubr.f32.gmra.mrb[0].mxu0 %v299
        %v412 = vpop.f32.mrb[0].mxu0
        %v413 = vadd.f32 0.0, %v412
        %v414 = vpop.f32.mrb[0].mxu0
        %415 = vmatprep.mubr.f32.mxu0 0.0
        %416 = vmatmul.mubr.f32.gmra.mrb[0].mxu0 %v302
        %v417 = vpop.f32.mrb[0].mxu0
        %v418 = vadd.f32 0.0, %v417
        %v419 = vpop.f32.mrb[0].mxu0
        %420 = vmatprep.mubr.f32.mxu0 0.0
        %421 = vmatmul.mubr.f32.gmra.mrb[0].mxu0 %v305
        %v422 = vpop.f32.mrb[0].mxu0
        %v423 = vadd.f32 0.0, %v422
        %v424 = vpop.f32.mrb[0].mxu0
        %425 = vmatprep.mubr.f32.mxu0 0.0
        %426 = vmatmul.mubr.f32.gmra.mrb[0].mxu0 %v308
        %v427 = vpop.f32.mrb[0].mxu0
        %v428 = vadd.f32 0.0, %v427
        %v429 = vpop.f32.mrb[0].mxu0
        %430 = vmatprep.mubr.f32.mxu0 0.0
        %431 = vmatmul.mubr.f32.gmra.mrb[0].mxu0 %v311
        %v432 = vpop.f32.mrb[0].mxu0
        %v433 = vadd.f32 0.0, %v432
        %v434 = vpop.f32.mrb[0].mxu0
        %435 = vmatprep.mubr.f32.mxu0 0.0
        %436 = vmatmul.mubr.f32.gmra.mrb[0].mxu0 %v314
        %v437 = vpop.f32.mrb[0].mxu0
        %v438 = vadd.f32 0.0, %v437
        %v439 = vpop.f32.mrb[0].mxu0
        %440 = vmatprep.mubr.f32.mxu0 0.0
        %441 = vmatmul.mubr.f32.gmra.mrb[0].mxu0 %v317
        %v442 = vpop.f32.mrb[0].mxu0
        %v443 = vadd.f32 0.0, %v442
        %v444 = vpop.f32.mrb[0].mxu0
        %445 = vmatprep.mubr.f32.mxu0 0.0
        %446 = vmatmul.mubr.f32.gmra.mrb[0].mxu0 %v320
        %v447 = vpop.f32.mrb[0].mxu0
        %v448 = vadd.f32 0.0, %v447
        %v449 = vpop.f32.mrb[0].mxu0
        %450 = vmatprep.mubr.f32.mxu0 0.0
        %451 = vmatmul.mubr.f32.gmra.mrb[0].mxu0 %v323
        %v452 = vpop.f32.mrb[0].mxu0
        %v453 = vadd.f32 0.0, %v452
        %v454 = vpop.f32.mrb[0].mxu0
        %455 = vmatprep.mubr.f32.mxu0 0.0
        %456 = vmatmul.mubr.f32.gmra.mrb[0].mxu0 %v326
        %v457 = vpop.f32.mrb[0].mxu0
        %v458 = vadd.f32 0.0, %v457
        %v459 = vpop.f32.mrb[0].mxu0
        %460 = vmatprep.mubr.f32.mxu0 0.0
        %461 = vmatmul.mubr.f32.gmra.mrb[0].mxu0 %v329
        %v462 = vpop.f32.mrb[0].mxu0
        %v463 = vadd.f32 0.0, %v462
        %v464 = vpop.f32.mrb[0].mxu0
        %465 = vmatprep.mubr.f32.mxu0 0.0
        %466 = vmatmul.mubr.f32.gmra.mrb[0].mxu0 %v332
        %v467 = vpop.f32.mrb[0].mxu0
        %v468 = vadd.f32 0.0, %v467
        %v469 = vpop.f32.mrb[0].mxu0
        %470 = vmatprep.mubr.f32.mxu0 0.0
        %471 = vmatmul.mubr.f32.gmra.mrb[0].mxu0 %v335
        %v472 = vpop.f32.mrb[0].mxu0
        %v473 = vadd.f32 0.0, %v472
        %v474 = vpop.f32.mrb[0].mxu0
        %475 = vmatprep.mubr.f32.mxu0 0.0
        %476 = vmatmul.mubr.f32.gmra.mrb[0].mxu0 %v338
        %v477 = vpop.f32.mrb[0].mxu0
        %v478 = vadd.f32 0.0, %v477
        %v479 = vpop.f32.mrb[0].mxu0
        %480 = vmatprep.mubr.f32.mxu0 0.0
        %481 = vmatmul.mubr.f32.gmra.mrb[0].mxu0 %v341
        %v482 = vpop.f32.mrb[0].mxu0
        %v483 = vadd.f32 0.0, %v482
        %v484 = vpop.f32.mrb[0].mxu0
        %485 = vmatprep.mubr.f32.mxu0 0.0
        %486 = vmatmul.mubr.f32.gmra.mrb[0].mxu0 %v344
        %v487 = vpop.f32.mrb[0].mxu0
        %v488 = vadd.f32 0.0, %v487
        %v489 = vpop.f32.mrb[0].mxu0
        %490 = vdwg.mxu0
        %v492 = vsel %vm297, %v261, 0
        %v495 = vsel %vm297, %v262, 0
        %v498 = vsel %vm297, %v263, 0
        %v501 = vsel %vm297, %v264, 0
        %v504 = vsel %vm297, %v265, 0
        %v507 = vsel %vm297, %v266, 0
        %v510 = vsel %vm297, %v267, 0
        %v513 = vsel %vm297, %v268, 0
        %v516 = vsel %vm297, %v269, 0
        %v519 = vsel %vm297, %v270, 0
        %v522 = vsel %vm297, %v271, 0
        %v525 = vsel %vm297, %v272, 0
        %v528 = vsel %vm297, %v273, 0
        %v531 = vsel %vm297, %v274, 0
        %v534 = vsel %vm297, %v275, 0
        %v537 = vsel %vm297, %v276, 0
        %539 = vmatprep.subr.mxu0 0.0
        %540 = vmatpush1.msra.mxu0 %v277
        %541 = vmatprep.subr.mxu0 0.0
        %542 = vmatpush1.msra.mxu0 0.0
        %543 = vmatprep.subr.mxu0 0.0
        %544 = vmatpush1.msra.mxu0 0.0
        %545 = vmatprep.subr.mxu0 0.0
        %546 = vmatpush1.msra.mxu0 0.0
        %547 = vmatprep.subr.mxu0 0.0
        %548 = vmatpush1.msra.mxu0 0.0
        %549 = vmatprep.subr.mxu0 0.0
        %550 = vmatpush1.msra.mxu0 0.0
        %551 = vmatprep.subr.mxu0 0.0
        %552 = vmatpush1.msra.mxu0 0.0
        %553 = vmatprep.subr.mxu0 0.0
        %554 = vmatpush1.msra.mxu0 0.0
        %555 = vmatprep.subr.mxu0 0.0
        %556 = vmatpush1.msra.mxu0 0.0
        %557 = vmatprep.subr.mxu0 0.0
        %558 = vmatpush1.msra.mxu0 0.0
        %559 = vmatprep.subr.mxu0 0.0
        %560 = vmatpush1.msra.mxu0 0.0
        %561 = vmatprep.subr.mxu0 0.0
        %562 = vmatpush1.msra.mxu0 0.0
        %563 = vmatprep.subr.mxu0 0.0
        %564 = vmatpush1.msra.mxu0 0.0
        %565 = vmatprep.subr.mxu0 0.0
        %566 = vmatpush1.msra.mxu0 0.0
        %567 = vmatprep.subr.mxu0 0.0
        %568 = vmatpush1.msra.mxu0 0.0
        %569 = vmatprep.subr.mxu0 0.0
        %570 = vmatpush1.msra.mxu0 0.0
        %571 = vmatprep.subr.mxu0 0.0
        %572 = vmatpush1.msra.mxu0 0.0
        %573 = vmatprep.subr.mxu0 0.0
        %574 = vmatpush1.msra.mxu0 0.0
        %575 = vmatprep.subr.mxu0 0.0
        %576 = vmatpush1.msra.mxu0 0.0
        %577 = vmatprep.subr.mxu0 0.0
        %578 = vmatpush1.msra.mxu0 0.0
        %579 = vmatprep.subr.mxu0 0.0
        %580 = vmatpush1.msra.mxu0 0.0
        %581 = vmatprep.subr.mxu0 0.0
        %582 = vmatpush1.msra.mxu0 0.0
        %583 = vmatprep.subr.mxu0 0.0
        %584 = vmatpush1.msra.mxu0 0.0
        %585 = vmatprep.subr.mxu0 0.0
        %586 = vmatpush1.msra.mxu0 0.0
        %587 = vmatprep.subr.mxu0 0.0
        %588 = vmatpush1.msra.mxu0 0.0
        %589 = vmatprep.subr.mxu0 0.0
        %590 = vmatpush1.msra.mxu0 0.0
        %591 = vmatprep.subr.mxu0 0.0
        %592 = vmatpush1.msra.mxu0 0.0
        %593 = vmatprep.subr.mxu0 0.0
        %594 = vmatpush1.msra.mxu0 0.0
        %595 = vmatprep.subr.mxu0 0.0
        %596 = vmatpush1.msra.mxu0 0.0
        %597 = vmatprep.subr.mxu0 0.0
        %598 = vmatpush1.msra.mxu0 0.0
        %599 = vmatprep.subr.mxu0 0.0
        %600 = vmatpush1.msra.mxu0 0.0
        %601 = vmatprep.subr.mxu0 0.0
        %602 = vmatpush1.msra.mxu0 0.0
        %603 = vmatprep.mubr.f32.mxu0 0.0
        %604 = vmatmul.mubr.f32.gmra.mrb[0].mxu0 %v492
        %v605 = vpop.f32.mrb[0].mxu0
        %v606 = vadd.f32 %v413, %v605
        %v607 = vpop.f32.mrb[0].mxu0
        %608 = vmatprep.mubr.f32.mxu0 0.0
        %609 = vmatmul.mubr.f32.gmra.mrb[0].mxu0 %v495
        %v610 = vpop.f32.mrb[0].mxu0
        %v611 = vadd.f32 %v418, %v610
        %v612 = vpop.f32.mrb[0].mxu0
        %613 = vmatprep.mubr.f32.mxu0 0.0
        %614 = vmatmul.mubr.f32.gmra.mrb[0].mxu0 %v498
        %v615 = vpop.f32.mrb[0].mxu0
        %v616 = vadd.f32 %v423, %v615
        %v617 = vpop.f32.mrb[0].mxu0
        %618 = vmatprep.mubr.f32.mxu0 0.0
        %619 = vmatmul.mubr.f32.gmra.mrb[0].mxu0 %v501
        %v620 = vpop.f32.mrb[0].mxu0
        %v621 = vadd.f32 %v428, %v620
        %v622 = vpop.f32.mrb[0].mxu0
        %623 = vmatprep.mubr.f32.mxu0 0.0
        %624 = vmatmul.mubr.f32.gmra.mrb[0].mxu0 %v504
        %v625 = vpop.f32.mrb[0].mxu0
        %v626 = vadd.f32 %v433, %v625
        %v627 = vpop.f32.mrb[0].mxu0
        %628 = vmatprep.mubr.f32.mxu0 0.0
        %629 = vmatmul.mubr.f32.gmra.mrb[0].mxu0 %v507
        %v630 = vpop.f32.mrb[0].mxu0
        %v631 = vadd.f32 %v438, %v630
        %v632 = vpop.f32.mrb[0].mxu0
        %633 = vmatprep.mubr.f32.mxu0 0.0
        %634 = vmatmul.mubr.f32.gmra.mrb[0].mxu0 %v510
        %v635 = vpop.f32.mrb[0].mxu0
        %v636 = vadd.f32 %v443, %v635
        %v637 = vpop.f32.mrb[0].mxu0
        %638 = vmatprep.mubr.f32.mxu0 0.0
        %639 = vmatmul.mubr.f32.gmra.mrb[0].mxu0 %v513
        %v640 = vpop.f32.mrb[0].mxu0
        %v641 = vadd.f32 %v448, %v640
        %v642 = vpop.f32.mrb[0].mxu0
        %643 = vmatprep.mubr.f32.mxu0 0.0
        %644 = vmatmul.mubr.f32.gmra.mrb[0].mxu0 %v516
        %v645 = vpop.f32.mrb[0].mxu0
        %v646 = vadd.f32 %v453, %v645
        %v647 = vpop.f32.mrb[0].mxu0
        %648 = vmatprep.mubr.f32.mxu0 0.0
        %649 = vmatmul.mubr.f32.gmra.mrb[0].mxu0 %v519
        %v650 = vpop.f32.mrb[0].mxu0
        %v651 = vadd.f32 %v458, %v650
        %v652 = vpop.f32.mrb[0].mxu0
        %653 = vmatprep.mubr.f32.mxu0 0.0
        %654 = vmatmul.mubr.f32.gmra.mrb[0].mxu0 %v522
        %v655 = vpop.f32.mrb[0].mxu0
        %v656 = vadd.f32 %v463, %v655
        %v657 = vpop.f32.mrb[0].mxu0
        %658 = vmatprep.mubr.f32.mxu0 0.0
        %659 = vmatmul.mubr.f32.gmra.mrb[0].mxu0 %v525
        %v660 = vpop.f32.mrb[0].mxu0
        %v661 = vadd.f32 %v468, %v660
        %v662 = vpop.f32.mrb[0].mxu0
        %663 = vmatprep.mubr.f32.mxu0 0.0
        %664 = vmatmul.mubr.f32.gmra.mrb[0].mxu0 %v528
        %v665 = vpop.f32.mrb[0].mxu0
        %v666 = vadd.f32 %v473, %v665
        %v667 = vpop.f32.mrb[0].mxu0
        %668 = vmatprep.mubr.f32.mxu0 0.0
        %669 = vmatmul.mubr.f32.gmra.mrb[0].mxu0 %v531
        %v670 = vpop.f32.mrb[0].mxu0
        %v671 = vadd.f32 %v478, %v670
        %v672 = vpop.f32.mrb[0].mxu0
        %673 = vmatprep.mubr.f32.mxu0 0.0
        %674 = vmatmul.mubr.f32.gmra.mrb[0].mxu0 %v534
        %v675 = vpop.f32.mrb[0].mxu0
        %v676 = vadd.f32 %v483, %v675
        %v677 = vpop.f32.mrb[0].mxu0
        %678 = vmatprep.mubr.f32.mxu0 0.0
        %679 = vmatmul.mubr.f32.gmra.mrb[0].mxu0 %v537
        %v680 = vpop.f32.mrb[0].mxu0
        %v681 = vadd.f32 %v488, %v680
        %v682 = vpop.f32.mrb[0].mxu0
        %683 = vdwg.mxu0
        %s684 = scalar_lea.vmem %s0, 256
        %v685 = vld [vmem:[%s684] sm:$0xff]
        %v686 = vld [vmem:[%s684 + $0x8] sm:$0xff]
        %v687 = vld [vmem:[%s684 + $0x10] sm:$0xff]
        %v688 = vld [vmem:[%s684 + $0x18] sm:$0xff]
        %v689 = vld [vmem:[%s684 + $0x20] sm:$0xff]
        %v690 = vld [vmem:[%s684 + $0x28] sm:$0xff]
        %v691 = vld [vmem:[%s684 + $0x30] sm:$0xff]
        %v692 = vld [vmem:[%s684 + $0x38] sm:$0xff]
        %v693 = vld [vmem:[%s684 + $0x40] sm:$0xff]
        %v694 = vld [vmem:[%s684 + $0x48] sm:$0xff]
        %v695 = vld [vmem:[%s684 + $0x50] sm:$0xff]
        %v696 = vld [vmem:[%s684 + $0x58] sm:$0xff]
        %v697 = vld [vmem:[%s684 + $0x60] sm:$0xff]
        %v698 = vld [vmem:[%s684 + $0x68] sm:$0xff]
        %v699 = vld [vmem:[%s684 + $0x70] sm:$0xff]
        %v700 = vld [vmem:[%s684 + $0x78] sm:$0xff]
        %s701 = scalar_lea.vmem %s237, 16 [#allocation2]
        %v702 = vld [vmem:[%s701] sm:$0xff]
        %v704 = vsel %vm297, %v685, 0
        %v707 = vsel %vm297, %v686, 0
        %v710 = vsel %vm297, %v687, 0
        %v713 = vsel %vm297, %v688, 0
        %v716 = vsel %vm297, %v689, 0
        %v719 = vsel %vm297, %v690, 0
        %v722 = vsel %vm297, %v691, 0
        %v725 = vsel %vm297, %v692, 0
        %v728 = vsel %vm297, %v693, 0
        %v731 = vsel %vm297, %v694, 0
        %v734 = vsel %vm297, %v695, 0
        %v737 = vsel %vm297, %v696, 0
        %v740 = vsel %vm297, %v697, 0
        %v743 = vsel %vm297, %v698, 0
        %v746 = vsel %vm297, %v699, 0
        %v749 = vsel %vm297, %v700, 0
        %751 = vmatprep.subr.mxu0 0.0
        %752 = vmatpush1.msra.mxu0 %v702
        %753 = vmatprep.subr.mxu0 0.0
        %754 = vmatpush1.msra.mxu0 0.0
        %755 = vmatprep.subr.mxu0 0.0
        %756 = vmatpush1.msra.mxu0 0.0
        %757 = vmatprep.subr.mxu0 0.0
        %758 = vmatpush1.msra.mxu0 0.0
        %759 = vmatprep.subr.mxu0 0.0
        %760 = vmatpush1.msra.mxu0 0.0
        %761 = vmatprep.subr.mxu0 0.0
        %762 = vmatpush1.msra.mxu0 0.0
        %763 = vmatprep.subr.mxu0 0.0
        %764 = vmatpush1.msra.mxu0 0.0
        %765 = vmatprep.subr.mxu0 0.0
        %766 = vmatpush1.msra.mxu0 0.0
        %767 = vmatprep.subr.mxu0 0.0
        %768 = vmatpush1.msra.mxu0 0.0
        %769 = vmatprep.subr.mxu0 0.0
        %770 = vmatpush1.msra.mxu0 0.0
        %771 = vmatprep.subr.mxu0 0.0
        %772 = vmatpush1.msra.mxu0 0.0
        %773 = vmatprep.subr.mxu0 0.0
        %774 = vmatpush1.msra.mxu0 0.0
        %775 = vmatprep.subr.mxu0 0.0
        %776 = vmatpush1.msra.mxu0 0.0
        %777 = vmatprep.subr.mxu0 0.0
        %778 = vmatpush1.msra.mxu0 0.0
        %779 = vmatprep.subr.mxu0 0.0
        %780 = vmatpush1.msra.mxu0 0.0
        %781 = vmatprep.subr.mxu0 0.0
        %782 = vmatpush1.msra.mxu0 0.0
        %783 = vmatprep.subr.mxu0 0.0
        %784 = vmatpush1.msra.mxu0 0.0
        %785 = vmatprep.subr.mxu0 0.0
        %786 = vmatpush1.msra.mxu0 0.0
        %787 = vmatprep.subr.mxu0 0.0
        %788 = vmatpush1.msra.mxu0 0.0
        %789 = vmatprep.subr.mxu0 0.0
        %790 = vmatpush1.msra.mxu0 0.0
        %791 = vmatprep.subr.mxu0 0.0
        %792 = vmatpush1.msra.mxu0 0.0
        %793 = vmatprep.subr.mxu0 0.0
        %794 = vmatpush1.msra.mxu0 0.0
        %795 = vmatprep.subr.mxu0 0.0
        %796 = vmatpush1.msra.mxu0 0.0
        %797 = vmatprep.subr.mxu0 0.0
        %798 = vmatpush1.msra.mxu0 0.0
        %799 = vmatprep.subr.mxu0 0.0
        %800 = vmatpush1.msra.mxu0 0.0
        %801 = vmatprep.subr.mxu0 0.0
        %802 = vmatpush1.msra.mxu0 0.0
        %803 = vmatprep.subr.mxu0 0.0
        %804 = vmatpush1.msra.mxu0 0.0
        %805 = vmatprep.subr.mxu0 0.0
        %806 = vmatpush1.msra.mxu0 0.0
        %807 = vmatprep.subr.mxu0 0.0
        %808 = vmatpush1.msra.mxu0 0.0
        %809 = vmatprep.subr.mxu0 0.0
        %810 = vmatpush1.msra.mxu0 0.0
        %811 = vmatprep.subr.mxu0 0.0
        %812 = vmatpush1.msra.mxu0 0.0
        %813 = vmatprep.subr.mxu0 0.0
        %814 = vmatpush1.msra.mxu0 0.0
        %815 = vmatprep.mubr.f32.mxu0 0.0
        %816 = vmatmul.mubr.f32.gmra.mrb[0].mxu0 %v704
        %v817 = vpop.f32.mrb[0].mxu0
        %v818 = vadd.f32 0.0, %v817
        %v819 = vpop.f32.mrb[0].mxu0
        %820 = vmatprep.mubr.f32.mxu0 0.0
        %821 = vmatmul.mubr.f32.gmra.mrb[0].mxu0 %v707
        %v822 = vpop.f32.mrb[0].mxu0
        %v823 = vadd.f32 0.0, %v822
        %v824 = vpop.f32.mrb[0].mxu0
        %825 = vmatprep.mubr.f32.mxu0 0.0
        %826 = vmatmul.mubr.f32.gmra.mrb[0].mxu0 %v710
        %v827 = vpop.f32.mrb[0].mxu0
        %v828 = vadd.f32 0.0, %v827
        %v829 = vpop.f32.mrb[0].mxu0
        %830 = vmatprep.mubr.f32.mxu0 0.0
        %831 = vmatmul.mubr.f32.gmra.mrb[0].mxu0 %v713
        %v832 = vpop.f32.mrb[0].mxu0
        %v833 = vadd.f32 0.0, %v832
        %v834 = vpop.f32.mrb[0].mxu0
        %835 = vmatprep.mubr.f32.mxu0 0.0
        %836 = vmatmul.mubr.f32.gmra.mrb[0].mxu0 %v716
        %v837 = vpop.f32.mrb[0].mxu0
        %v838 = vadd.f32 0.0, %v837
        %v839 = vpop.f32.mrb[0].mxu0
        %840 = vmatprep.mubr.f32.mxu0 0.0
        %841 = vmatmul.mubr.f32.gmra.mrb[0].mxu0 %v719
        %v842 = vpop.f32.mrb[0].mxu0
        %v843 = vadd.f32 0.0, %v842
        %v844 = vpop.f32.mrb[0].mxu0
        %845 = vmatprep.mubr.f32.mxu0 0.0
        %846 = vmatmul.mubr.f32.gmra.mrb[0].mxu0 %v722
        %v847 = vpop.f32.mrb[0].mxu0
        %v848 = vadd.f32 0.0, %v847
        %v849 = vpop.f32.mrb[0].mxu0
        %850 = vmatprep.mubr.f32.mxu0 0.0
        %851 = vmatmul.mubr.f32.gmra.mrb[0].mxu0 %v725
        %v852 = vpop.f32.mrb[0].mxu0
        %v853 = vadd.f32 0.0, %v852
        %v854 = vpop.f32.mrb[0].mxu0
        %855 = vmatprep.mubr.f32.mxu0 0.0
        %856 = vmatmul.mubr.f32.gmra.mrb[0].mxu0 %v728
        %v857 = vpop.f32.mrb[0].mxu0
        %v858 = vadd.f32 0.0, %v857
        %v859 = vpop.f32.mrb[0].mxu0
        %860 = vmatprep.mubr.f32.mxu0 0.0
        %861 = vmatmul.mubr.f32.gmra.mrb[0].mxu0 %v731
        %v862 = vpop.f32.mrb[0].mxu0
        %v863 = vadd.f32 0.0, %v862
        %v864 = vpop.f32.mrb[0].mxu0
        %865 = vmatprep.mubr.f32.mxu0 0.0
        %866 = vmatmul.mubr.f32.gmra.mrb[0].mxu0 %v734
        %v867 = vpop.f32.mrb[0].mxu0
        %v868 = vadd.f32 0.0, %v867
        %v869 = vpop.f32.mrb[0].mxu0
        %870 = vmatprep.mubr.f32.mxu0 0.0
        %871 = vmatmul.mubr.f32.gmra.mrb[0].mxu0 %v737
        %v872 = vpop.f32.mrb[0].mxu0
        %v873 = vadd.f32 0.0, %v872
        %v874 = vpop.f32.mrb[0].mxu0
        %875 = vmatprep.mubr.f32.mxu0 0.0
        %876 = vmatmul.mubr.f32.gmra.mrb[0].mxu0 %v740
        %v877 = vpop.f32.mrb[0].mxu0
        %v878 = vadd.f32 0.0, %v877
        %v879 = vpop.f32.mrb[0].mxu0
        %880 = vmatprep.mubr.f32.mxu0 0.0
        %881 = vmatmul.mubr.f32.gmra.mrb[0].mxu0 %v743
        %v882 = vpop.f32.mrb[0].mxu0
        %v883 = vadd.f32 0.0, %v882
        %v884 = vpop.f32.mrb[0].mxu0
        %885 = vmatprep.mubr.f32.mxu0 0.0
        %886 = vmatmul.mubr.f32.gmra.mrb[0].mxu0 %v746
        %v887 = vpop.f32.mrb[0].mxu0
        %v888 = vadd.f32 0.0, %v887
        %v889 = vpop.f32.mrb[0].mxu0
        %890 = vmatprep.mubr.f32.mxu0 0.0
        %891 = vmatmul.mubr.f32.gmra.mrb[0].mxu0 %v749
        %v892 = vpop.f32.mrb[0].mxu0
        %v893 = vadd.f32 0.0, %v892
        %v894 = vpop.f32.mrb[0].mxu0
        %895 = vdwg.mxu0
        %v896 = vadd.f32 %v606, %v818
        %v897 = vadd.f32 %v611, %v823
        %v898 = vadd.f32 %v616, %v828
        %v899 = vadd.f32 %v621, %v833
        %v900 = vadd.f32 %v626, %v838
        %v901 = vadd.f32 %v631, %v843
        %v902 = vadd.f32 %v636, %v848
        %v903 = vadd.f32 %v641, %v853
        %v904 = vadd.f32 %v646, %v858
        %v905 = vadd.f32 %v651, %v863
        %v906 = vadd.f32 %v656, %v868
        %v907 = vadd.f32 %v661, %v873
        %v908 = vadd.f32 %v666, %v878
        %v909 = vadd.f32 %v671, %v883
        %v910 = vadd.f32 %v676, %v888
        %v911 = vadd.f32 %v681, %v893
        %s912 = scalar_lea.vmem %s0, 384
        %v913 = vld [vmem:[%s912] sm:$0xff]
        %v914 = vld [vmem:[%s912 + $0x8] sm:$0xff]
        %v915 = vld [vmem:[%s912 + $0x10] sm:$0xff]
        %v916 = vld [vmem:[%s912 + $0x18] sm:$0xff]
        %v917 = vld [vmem:[%s912 + $0x20] sm:$0xff]
        %v918 = vld [vmem:[%s912 + $0x28] sm:$0xff]
        %v919 = vld [vmem:[%s912 + $0x30] sm:$0xff]
        %v920 = vld [vmem:[%s912 + $0x38] sm:$0xff]
        %v921 = vld [vmem:[%s912 + $0x40] sm:$0xff]
        %v922 = vld [vmem:[%s912 + $0x48] sm:$0xff]
        %v923 = vld [vmem:[%s912 + $0x50] sm:$0xff]
        %v924 = vld [vmem:[%s912 + $0x58] sm:$0xff]
        %v925 = vld [vmem:[%s912 + $0x60] sm:$0xff]
        %v926 = vld [vmem:[%s912 + $0x68] sm:$0xff]
        %v927 = vld [vmem:[%s912 + $0x70] sm:$0xff]
        %v928 = vld [vmem:[%s912 + $0x78] sm:$0xff]
        %s929 = scalar_lea.vmem %s237, 24 [#allocation2]
        %v930 = vld [vmem:[%s929] sm:$0xff]
        %v932 = vsel %vm297, %v913, 0
        %v935 = vsel %vm297, %v914, 0
        %v938 = vsel %vm297, %v915, 0
        %v941 = vsel %vm297, %v916, 0
        %v944 = vsel %vm297, %v917, 0
        %v947 = vsel %vm297, %v918, 0
        %v950 = vsel %vm297, %v919, 0
        %v953 = vsel %vm297, %v920, 0
        %v956 = vsel %vm297, %v921, 0
        %v959 = vsel %vm297, %v922, 0
        %v962 = vsel %vm297, %v923, 0
        %v965 = vsel %vm297, %v924, 0
        %v968 = vsel %vm297, %v925, 0
        %v971 = vsel %vm297, %v926, 0
        %v974 = vsel %vm297, %v927, 0
        %v977 = vsel %vm297, %v928, 0
        %979 = vmatprep.subr.mxu0 0.0
        %980 = vmatpush1.msra.mxu0 %v930
        %981 = vmatprep.subr.mxu0 0.0
        %982 = vmatpush1.msra.mxu0 0.0
        %983 = vmatprep.subr.mxu0 0.0
        %984 = vmatpush1.msra.mxu0 0.0
        %985 = vmatprep.subr.mxu0 0.0
        %986 = vmatpush1.msra.mxu0 0.0
        %987 = vmatprep.subr.mxu0 0.0
        %988 = vmatpush1.msra.mxu0 0.0
        %989 = vmatprep.subr.mxu0 0.0
        %990 = vmatpush1.msra.mxu0 0.0
        %991 = vmatprep.subr.mxu0 0.0
        %992 = vmatpush1.msra.mxu0 0.0
        %993 = vmatprep.subr.mxu0 0.0
        %994 = vmatpush1.msra.mxu0 0.0
        %995 = vmatprep.subr.mxu0 0.0
        %996 = vmatpush1.msra.mxu0 0.0
        %997 = vmatprep.subr.mxu0 0.0
        %998 = vmatpush1.msra.mxu0 0.0
        %999 = vmatprep.subr.mxu0 0.0
        %1000 = vmatpush1.msra.mxu0 0.0
        %1001 = vmatprep.subr.mxu0 0.0
        %1002 = vmatpush1.msra.mxu0 0.0
        %1003 = vmatprep.subr.mxu0 0.0
        %1004 = vmatpush1.msra.mxu0 0.0
        %1005 = vmatprep.subr.mxu0 0.0
        %1006 = vmatpush1.msra.mxu0 0.0
        %1007 = vmatprep.subr.mxu0 0.0
        %1008 = vmatpush1.msra.mxu0 0.0
        %1009 = vmatprep.subr.mxu0 0.0
        %1010 = vmatpush1.msra.mxu0 0.0
        %1011 = vmatprep.subr.mxu0 0.0
        %1012 = vmatpush1.msra.mxu0 0.0
        %1013 = vmatprep.subr.mxu0 0.0
        %1014 = vmatpush1.msra.mxu0 0.0
        %1015 = vmatprep.subr.mxu0 0.0
        %1016 = vmatpush1.msra.mxu0 0.0
        %1017 = vmatprep.subr.mxu0 0.0
        %1018 = vmatpush1.msra.mxu0 0.0
        %1019 = vmatprep.subr.mxu0 0.0
        %1020 = vmatpush1.msra.mxu0 0.0
        %1021 = vmatprep.subr.mxu0 0.0
        %1022 = vmatpush1.msra.mxu0 0.0
        %1023 = vmatprep.subr.mxu0 0.0
        %1024 = vmatpush1.msra.mxu0 0.0
        %1025 = vmatprep.subr.mxu0 0.0
        %1026 = vmatpush1.msra.mxu0 0.0
        %1027 = vmatprep.subr.mxu0 0.0
        %1028 = vmatpush1.msra.mxu0 0.0
        %1029 = vmatprep.subr.mxu0 0.0
        %1030 = vmatpush1.msra.mxu0 0.0
        %1031 = vmatprep.subr.mxu0 0.0
        %1032 = vmatpush1.msra.mxu0 0.0
        %1033 = vmatprep.subr.mxu0 0.0
        %1034 = vmatpush1.msra.mxu0 0.0
        %1035 = vmatprep.subr.mxu0 0.0
        %1036 = vmatpush1.msra.mxu0 0.0
        %1037 = vmatprep.subr.mxu0 0.0
        %1038 = vmatpush1.msra.mxu0 0.0
        %1039 = vmatprep.subr.mxu0 0.0
        %1040 = vmatpush1.msra.mxu0 0.0
        %1041 = vmatprep.subr.mxu0 0.0
        %1042 = vmatpush1.msra.mxu0 0.0
        %1043 = vmatprep.mubr.f32.mxu0 0.0
        %1044 = vmatmul.mubr.f32.gmra.mrb[0].mxu0 %v932
        %v1045 = vpop.f32.mrb[0].mxu0
        %v1046 = vadd.f32 0.0, %v1045
        %v1047 = vpop.f32.mrb[0].mxu0
        %1048 = vmatprep.mubr.f32.mxu0 0.0
        %1049 = vmatmul.mubr.f32.gmra.mrb[0].mxu0 %v935
        %v1050 = vpop.f32.mrb[0].mxu0
        %v1051 = vadd.f32 0.0, %v1050
        %v1052 = vpop.f32.mrb[0].mxu0
        %1053 = vmatprep.mubr.f32.mxu0 0.0
        %1054 = vmatmul.mubr.f32.gmra.mrb[0].mxu0 %v938
        %v1055 = vpop.f32.mrb[0].mxu0
        %v1056 = vadd.f32 0.0, %v1055
        %v1057 = vpop.f32.mrb[0].mxu0
        %1058 = vmatprep.mubr.f32.mxu0 0.0
        %1059 = vmatmul.mubr.f32.gmra.mrb[0].mxu0 %v941
        %v1060 = vpop.f32.mrb[0].mxu0
        %v1061 = vadd.f32 0.0, %v1060
        %v1062 = vpop.f32.mrb[0].mxu0
        %1063 = vmatprep.mubr.f32.mxu0 0.0
        %1064 = vmatmul.mubr.f32.gmra.mrb[0].mxu0 %v944
        %v1065 = vpop.f32.mrb[0].mxu0
        %v1066 = vadd.f32 0.0, %v1065
        %v1067 = vpop.f32.mrb[0].mxu0
        %1068 = vmatprep.mubr.f32.mxu0 0.0
        %1069 = vmatmul.mubr.f32.gmra.mrb[0].mxu0 %v947
        %v1070 = vpop.f32.mrb[0].mxu0
        %v1071 = vadd.f32 0.0, %v1070
        %v1072 = vpop.f32.mrb[0].mxu0
        %1073 = vmatprep.mubr.f32.mxu0 0.0
        %1074 = vmatmul.mubr.f32.gmra.mrb[0].mxu0 %v950
        %v1075 = vpop.f32.mrb[0].mxu0
        %v1076 = vadd.f32 0.0, %v1075
        %v1077 = vpop.f32.mrb[0].mxu0
        %1078 = vmatprep.mubr.f32.mxu0 0.0
        %1079 = vmatmul.mubr.f32.gmra.mrb[0].mxu0 %v953
        %v1080 = vpop.f32.mrb[0].mxu0
        %v1081 = vadd.f32 0.0, %v1080
        %v1082 = vpop.f32.mrb[0].mxu0
        %1083 = vmatprep.mubr.f32.mxu0 0.0
        %1084 = vmatmul.mubr.f32.gmra.mrb[0].mxu0 %v956
        %v1085 = vpop.f32.mrb[0].mxu0
        %v1086 = vadd.f32 0.0, %v1085
        %v1087 = vpop.f32.mrb[0].mxu0
        %1088 = vmatprep.mubr.f32.mxu0 0.0
        %1089 = vmatmul.mubr.f32.gmra.mrb[0].mxu0 %v959
        %v1090 = vpop.f32.mrb[0].mxu0
        %v1091 = vadd.f32 0.0, %v1090
        %v1092 = vpop.f32.mrb[0].mxu0
        %1093 = vmatprep.mubr.f32.mxu0 0.0
        %1094 = vmatmul.mubr.f32.gmra.mrb[0].mxu0 %v962
        %v1095 = vpop.f32.mrb[0].mxu0
        %v1096 = vadd.f32 0.0, %v1095
        %v1097 = vpop.f32.mrb[0].mxu0
        %1098 = vmatprep.mubr.f32.mxu0 0.0
        %1099 = vmatmul.mubr.f32.gmra.mrb[0].mxu0 %v965
        %v1100 = vpop.f32.mrb[0].mxu0
        %v1101 = vadd.f32 0.0, %v1100
        %v1102 = vpop.f32.mrb[0].mxu0
        %1103 = vmatprep.mubr.f32.mxu0 0.0
        %1104 = vmatmul.mubr.f32.gmra.mrb[0].mxu0 %v968
        %v1105 = vpop.f32.mrb[0].mxu0
        %v1106 = vadd.f32 0.0, %v1105
        %v1107 = vpop.f32.mrb[0].mxu0
        %1108 = vmatprep.mubr.f32.mxu0 0.0
        %1109 = vmatmul.mubr.f32.gmra.mrb[0].mxu0 %v971
        %v1110 = vpop.f32.mrb[0].mxu0
        %v1111 = vadd.f32 0.0, %v1110
        %v1112 = vpop.f32.mrb[0].mxu0
        %1113 = vmatprep.mubr.f32.mxu0 0.0
        %1114 = vmatmul.mubr.f32.gmra.mrb[0].mxu0 %v974
        %v1115 = vpop.f32.mrb[0].mxu0
        %v1116 = vadd.f32 0.0, %v1115
        %v1117 = vpop.f32.mrb[0].mxu0
        %1118 = vmatprep.mubr.f32.mxu0 0.0
        %1119 = vmatmul.mubr.f32.gmra.mrb[0].mxu0 %v977
        %v1120 = vpop.f32.mrb[0].mxu0
        %v1121 = vadd.f32 0.0, %v1120
        %v1122 = vpop.f32.mrb[0].mxu0
        %1123 = vdwg.mxu0
        %v1124 = vadd.f32 %v896, %v1046
        %v1125 = vadd.f32 %v897, %v1051
        %v1126 = vadd.f32 %v898, %v1056
        %v1127 = vadd.f32 %v899, %v1061
        %v1128 = vadd.f32 %v900, %v1066
        %v1129 = vadd.f32 %v901, %v1071
        %v1130 = vadd.f32 %v902, %v1076
        %v1131 = vadd.f32 %v903, %v1081
        %v1132 = vadd.f32 %v904, %v1086
        %v1133 = vadd.f32 %v905, %v1091
        %v1134 = vadd.f32 %v906, %v1096
        %v1135 = vadd.f32 %v907, %v1101
        %v1136 = vadd.f32 %v908, %v1106
        %v1137 = vadd.f32 %v909, %v1111
        %v1138 = vadd.f32 %v910, %v1116
        %v1139 = vadd.f32 %v911, %v1121
        %v1140 = vld [vmem:[%s1] sm:$0xff]
        %v1141 = vld [vmem:[%s1 + $0x8] sm:$0xff]
        %s1142 = scalar_lea.vmem %s0, 512
        %v1143 = vld [vmem:[%s1142] sm:$0xff]
        %v1144 = vld [vmem:[%s1142 + $0x8] sm:$0xff]
        %v1145 = vld [vmem:[%s1142 + $0x10] sm:$0xff]
        %v1146 = vld [vmem:[%s1142 + $0x18] sm:$0xff]
        %v1147 = vld [vmem:[%s1142 + $0x20] sm:$0xff]
        %v1148 = vld [vmem:[%s1142 + $0x28] sm:$0xff]
        %v1149 = vld [vmem:[%s1142 + $0x30] sm:$0xff]
        %v1150 = vld [vmem:[%s1142 + $0x38] sm:$0xff]
        %v1151 = vld [vmem:[%s1142 + $0x40] sm:$0xff]
        %v1152 = vld [vmem:[%s1142 + $0x48] sm:$0xff]
        %v1153 = vld [vmem:[%s1142 + $0x50] sm:$0xff]
        %v1154 = vld [vmem:[%s1142 + $0x58] sm:$0xff]
        %v1155 = vld [vmem:[%s1142 + $0x60] sm:$0xff]
        %v1156 = vld [vmem:[%s1142 + $0x68] sm:$0xff]
        %v1157 = vld [vmem:[%s1142 + $0x70] sm:$0xff]
        %v1158 = vld [vmem:[%s1142 + $0x78] sm:$0xff]
        %s1159 = scalar_lea.vmem %s0, 640
        %v1160 = vld [vmem:[%s1159] sm:$0xff]
        %v1161 = vld [vmem:[%s1159 + $0x8] sm:$0xff]
        %v1162 = vld [vmem:[%s1159 + $0x10] sm:$0xff]
        %v1163 = vld [vmem:[%s1159 + $0x18] sm:$0xff]
        %v1164 = vld [vmem:[%s1159 + $0x20] sm:$0xff]
        %v1165 = vld [vmem:[%s1159 + $0x28] sm:$0xff]
        %v1166 = vld [vmem:[%s1159 + $0x30] sm:$0xff]
        %v1167 = vld [vmem:[%s1159 + $0x38] sm:$0xff]
        %v1168 = vld [vmem:[%s1159 + $0x40] sm:$0xff]
        %v1169 = vld [vmem:[%s1159 + $0x48] sm:$0xff]
        %v1170 = vld [vmem:[%s1159 + $0x50] sm:$0xff]
        %v1171 = vld [vmem:[%s1159 + $0x58] sm:$0xff]
        %v1172 = vld [vmem:[%s1159 + $0x60] sm:$0xff]
        %v1173 = vld [vmem:[%s1159 + $0x68] sm:$0xff]
        %v1174 = vld [vmem:[%s1159 + $0x70] sm:$0xff]
        %v1175 = vld [vmem:[%s1159 + $0x78] sm:$0xff]
        %v1177 = vsel %vm297, %v1160, 0
        %v1180 = vsel %vm297, %v1161, 0
        %v1183 = vsel %vm297, %v1162, 0
        %v1186 = vsel %vm297, %v1163, 0
        %v1189 = vsel %vm297, %v1164, 0
        %v1192 = vsel %vm297, %v1165, 0
        %v1195 = vsel %vm297, %v1166, 0
        %v1198 = vsel %vm297, %v1167, 0
        %v1201 = vsel %vm297, %v1168, 0
        %v1204 = vsel %vm297, %v1169, 0
        %v1207 = vsel %vm297, %v1170, 0
        %v1210 = vsel %vm297, %v1171, 0
        %v1213 = vsel %vm297, %v1172, 0
        %v1216 = vsel %vm297, %v1173, 0
        %v1219 = vsel %vm297, %v1174, 0
        %v1222 = vsel %vm297, %v1175, 0
        %1224 = vmatprep.subr.mxu0 0.0
        %1225 = vmatpush1.msra.mxu0 %v296
        %1226 = vmatprep.subr.mxu0 0.0
        %1227 = vmatpush1.msra.mxu0 0.0
        %1228 = vmatprep.subr.mxu0 0.0
        %1229 = vmatpush1.msra.mxu0 0.0
        %1230 = vmatprep.subr.mxu0 0.0
        %1231 = vmatpush1.msra.mxu0 0.0
        %1232 = vmatprep.subr.mxu0 0.0
        %1233 = vmatpush1.msra.mxu0 0.0
        %1234 = vmatprep.subr.mxu0 0.0
        %1235 = vmatpush1.msra.mxu0 0.0
        %1236 = vmatprep.subr.mxu0 0.0
        %1237 = vmatpush1.msra.mxu0 0.0
        %1238 = vmatprep.subr.mxu0 0.0
        %1239 = vmatpush1.msra.mxu0 0.0
        %1240 = vmatprep.subr.mxu0 0.0
        %1241 = vmatpush1.msra.mxu0 0.0
        %1242 = vmatprep.subr.mxu0 0.0
        %1243 = vmatpush1.msra.mxu0 0.0
        %1244 = vmatprep.subr.mxu0 0.0
        %1245 = vmatpush1.msra.mxu0 0.0
        %1246 = vmatprep.subr.mxu0 0.0
        %1247 = vmatpush1.msra.mxu0 0.0
        %1248 = vmatprep.subr.mxu0 0.0
        %1249 = vmatpush1.msra.mxu0 0.0
        %1250 = vmatprep.subr.mxu0 0.0
        %1251 = vmatpush1.msra.mxu0 0.0
        %1252 = vmatprep.subr.mxu0 0.0
        %1253 = vmatpush1.msra.mxu0 0.0
        %1254 = vmatprep.subr.mxu0 0.0
        %1255 = vmatpush1.msra.mxu0 0.0
        %1256 = vmatprep.subr.mxu0 0.0
        %1257 = vmatpush1.msra.mxu0 0.0
        %1258 = vmatprep.subr.mxu0 0.0
        %1259 = vmatpush1.msra.mxu0 0.0
        %1260 = vmatprep.subr.mxu0 0.0
        %1261 = vmatpush1.msra.mxu0 0.0
        %1262 = vmatprep.subr.mxu0 0.0
        %1263 = vmatpush1.msra.mxu0 0.0
        %1264 = vmatprep.subr.mxu0 0.0
        %1265 = vmatpush1.msra.mxu0 0.0
        %1266 = vmatprep.subr.mxu0 0.0
        %1267 = vmatpush1.msra.mxu0 0.0
        %1268 = vmatprep.subr.mxu0 0.0
        %1269 = vmatpush1.msra.mxu0 0.0
        %1270 = vmatprep.subr.mxu0 0.0
        %1271 = vmatpush1.msra.mxu0 0.0
        %1272 = vmatprep.subr.mxu0 0.0
        %1273 = vmatpush1.msra.mxu0 0.0
        %1274 = vmatprep.subr.mxu0 0.0
        %1275 = vmatpush1.msra.mxu0 0.0
        %1276 = vmatprep.subr.mxu0 0.0
        %1277 = vmatpush1.msra.mxu0 0.0
        %1278 = vmatprep.subr.mxu0 0.0
        %1279 = vmatpush1.msra.mxu0 0.0
        %1280 = vmatprep.subr.mxu0 0.0
        %1281 = vmatpush1.msra.mxu0 0.0
        %1282 = vmatprep.subr.mxu0 0.0
        %1283 = vmatpush1.msra.mxu0 0.0
        %1284 = vmatprep.subr.mxu0 0.0
        %1285 = vmatpush1.msra.mxu0 0.0
        %1286 = vmatprep.subr.mxu0 0.0
        %1287 = vmatpush1.msra.mxu0 0.0
        %1288 = vmatprep.mubr.f32.mxu0 0.0
        %1289 = vmatmul.mubr.f32.gmra.mrb[0].mxu0 %v1177
        %v1290 = vpop.f32.mrb[0].mxu0
        %v1291 = vadd.f32 0.0, %v1290
        %v1292 = vpop.f32.mrb[0].mxu0
        %1293 = vmatprep.mubr.f32.mxu0 0.0
        %1294 = vmatmul.mubr.f32.gmra.mrb[0].mxu0 %v1180
        %v1295 = vpop.f32.mrb[0].mxu0
        %v1296 = vadd.f32 0.0, %v1295
        %v1297 = vpop.f32.mrb[0].mxu0
        %1298 = vmatprep.mubr.f32.mxu0 0.0
        %1299 = vmatmul.mubr.f32.gmra.mrb[0].mxu0 %v1183
        %v1300 = vpop.f32.mrb[0].mxu0
        %v1301 = vadd.f32 0.0, %v1300
        %v1302 = vpop.f32.mrb[0].mxu0
        %1303 = vmatprep.mubr.f32.mxu0 0.0
        %1304 = vmatmul.mubr.f32.gmra.mrb[0].mxu0 %v1186
        %v1305 = vpop.f32.mrb[0].mxu0
        %v1306 = vadd.f32 0.0, %v1305
        %v1307 = vpop.f32.mrb[0].mxu0
        %1308 = vmatprep.mubr.f32.mxu0 0.0
        %1309 = vmatmul.mubr.f32.gmra.mrb[0].mxu0 %v1189
        %v1310 = vpop.f32.mrb[0].mxu0
        %v1311 = vadd.f32 0.0, %v1310
        %v1312 = vpop.f32.mrb[0].mxu0
        %1313 = vmatprep.mubr.f32.mxu0 0.0
        %1314 = vmatmul.mubr.f32.gmra.mrb[0].mxu0 %v1192
        %v1315 = vpop.f32.mrb[0].mxu0
        %v1316 = vadd.f32 0.0, %v1315
        %v1317 = vpop.f32.mrb[0].mxu0
        %1318 = vmatprep.mubr.f32.mxu0 0.0
        %1319 = vmatmul.mubr.f32.gmra.mrb[0].mxu0 %v1195
        %v1320 = vpop.f32.mrb[0].mxu0
        %v1321 = vadd.f32 0.0, %v1320
        %v1322 = vpop.f32.mrb[0].mxu0
        %1323 = vmatprep.mubr.f32.mxu0 0.0
        %1324 = vmatmul.mubr.f32.gmra.mrb[0].mxu0 %v1198
        %v1325 = vpop.f32.mrb[0].mxu0
        %v1326 = vadd.f32 0.0, %v1325
        %v1327 = vpop.f32.mrb[0].mxu0
        %1328 = vmatprep.mubr.f32.mxu0 0.0
        %1329 = vmatmul.mubr.f32.gmra.mrb[0].mxu0 %v1201
        %v1330 = vpop.f32.mrb[0].mxu0
        %v1331 = vadd.f32 0.0, %v1330
        %v1332 = vpop.f32.mrb[0].mxu0
        %1333 = vmatprep.mubr.f32.mxu0 0.0
        %1334 = vmatmul.mubr.f32.gmra.mrb[0].mxu0 %v1204
        %v1335 = vpop.f32.mrb[0].mxu0
        %v1336 = vadd.f32 0.0, %v1335
        %v1337 = vpop.f32.mrb[0].mxu0
        %1338 = vmatprep.mubr.f32.mxu0 0.0
        %1339 = vmatmul.mubr.f32.gmra.mrb[0].mxu0 %v1207
        %v1340 = vpop.f32.mrb[0].mxu0
        %v1341 = vadd.f32 0.0, %v1340
        %v1342 = vpop.f32.mrb[0].mxu0
        %1343 = vmatprep.mubr.f32.mxu0 0.0
        %1344 = vmatmul.mubr.f32.gmra.mrb[0].mxu0 %v1210
        %v1345 = vpop.f32.mrb[0].mxu0
        %v1346 = vadd.f32 0.0, %v1345
        %v1347 = vpop.f32.mrb[0].mxu0
        %1348 = vmatprep.mubr.f32.mxu0 0.0
        %1349 = vmatmul.mubr.f32.gmra.mrb[0].mxu0 %v1213
        %v1350 = vpop.f32.mrb[0].mxu0
        %v1351 = vadd.f32 0.0, %v1350
        %v1352 = vpop.f32.mrb[0].mxu0
        %1353 = vmatprep.mubr.f32.mxu0 0.0
        %1354 = vmatmul.mubr.f32.gmra.mrb[0].mxu0 %v1216
        %v1355 = vpop.f32.mrb[0].mxu0
        %v1356 = vadd.f32 0.0, %v1355
        %v1357 = vpop.f32.mrb[0].mxu0
        %1358 = vmatprep.mubr.f32.mxu0 0.0
        %1359 = vmatmul.mubr.f32.gmra.mrb[0].mxu0 %v1219
        %v1360 = vpop.f32.mrb[0].mxu0
        %v1361 = vadd.f32 0.0, %v1360
        %v1362 = vpop.f32.mrb[0].mxu0
        %1363 = vmatprep.mubr.f32.mxu0 0.0
        %1364 = vmatmul.mubr.f32.gmra.mrb[0].mxu0 %v1222
        %v1365 = vpop.f32.mrb[0].mxu0
        %v1366 = vadd.f32 0.0, %v1365
        %v1367 = vpop.f32.mrb[0].mxu0
        %1368 = vdwg.mxu0
        %v1370 = vsel %vm297, %v1143, 0
        %v1373 = vsel %vm297, %v1144, 0
        %v1376 = vsel %vm297, %v1145, 0
        %v1379 = vsel %vm297, %v1146, 0
        %v1382 = vsel %vm297, %v1147, 0
        %v1385 = vsel %vm297, %v1148, 0
        %v1388 = vsel %vm297, %v1149, 0
        %v1391 = vsel %vm297, %v1150, 0
        %v1394 = vsel %vm297, %v1151, 0
        %v1397 = vsel %vm297, %v1152, 0
        %v1400 = vsel %vm297, %v1153, 0
        %v1403 = vsel %vm297, %v1154, 0
        %v1406 = vsel %vm297, %v1155, 0
        %v1409 = vsel %vm297, %v1156, 0
        %v1412 = vsel %vm297, %v1157, 0
        %v1415 = vsel %vm297, %v1158, 0
        %1417 = vmatprep.subr.mxu0 0.0
        %1418 = vmatpush1.msra.mxu0 %v277
        %1419 = vmatprep.subr.mxu0 0.0
        %1420 = vmatpush1.msra.mxu0 0.0
        %1421 = vmatprep.subr.mxu0 0.0
        %1422 = vmatpush1.msra.mxu0 0.0
        %1423 = vmatprep.subr.mxu0 0.0
        %1424 = vmatpush1.msra.mxu0 0.0
        %1425 = vmatprep.subr.mxu0 0.0
        %1426 = vmatpush1.msra.mxu0 0.0
        %1427 = vmatprep.subr.mxu0 0.0
        %1428 = vmatpush1.msra.mxu0 0.0
        %1429 = vmatprep.subr.mxu0 0.0
        %1430 = vmatpush1.msra.mxu0 0.0
        %1431 = vmatprep.subr.mxu0 0.0
        %1432 = vmatpush1.msra.mxu0 0.0
        %1433 = vmatprep.subr.mxu0 0.0
        %1434 = vmatpush1.msra.mxu0 0.0
        %1435 = vmatprep.subr.mxu0 0.0
        %1436 = vmatpush1.msra.mxu0 0.0
        %1437 = vmatprep.subr.mxu0 0.0
        %1438 = vmatpush1.msra.mxu0 0.0
        %1439 = vmatprep.subr.mxu0 0.0
        %1440 = vmatpush1.msra.mxu0 0.0
        %1441 = vmatprep.subr.mxu0 0.0
        %1442 = vmatpush1.msra.mxu0 0.0
        %1443 = vmatprep.subr.mxu0 0.0
        %1444 = vmatpush1.msra.mxu0 0.0
        %1445 = vmatprep.subr.mxu0 0.0
        %1446 = vmatpush1.msra.mxu0 0.0
        %1447 = vmatprep.subr.mxu0 0.0
        %1448 = vmatpush1.msra.mxu0 0.0
        %1449 = vmatprep.subr.mxu0 0.0
        %1450 = vmatpush1.msra.mxu0 0.0
        %1451 = vmatprep.subr.mxu0 0.0
        %1452 = vmatpush1.msra.mxu0 0.0
        %1453 = vmatprep.subr.mxu0 0.0
        %1454 = vmatpush1.msra.mxu0 0.0
        %1455 = vmatprep.subr.mxu0 0.0
        %1456 = vmatpush1.msra.mxu0 0.0
        %1457 = vmatprep.subr.mxu0 0.0
        %1458 = vmatpush1.msra.mxu0 0.0
        %1459 = vmatprep.subr.mxu0 0.0
        %1460 = vmatpush1.msra.mxu0 0.0
        %1461 = vmatprep.subr.mxu0 0.0
        %1462 = vmatpush1.msra.mxu0 0.0
        %1463 = vmatprep.subr.mxu0 0.0
        %1464 = vmatpush1.msra.mxu0 0.0
        %1465 = vmatprep.subr.mxu0 0.0
        %1466 = vmatpush1.msra.mxu0 0.0
        %1467 = vmatprep.subr.mxu0 0.0
        %1468 = vmatpush1.msra.mxu0 0.0
        %1469 = vmatprep.subr.mxu0 0.0
        %1470 = vmatpush1.msra.mxu0 0.0
        %1471 = vmatprep.subr.mxu0 0.0
        %1472 = vmatpush1.msra.mxu0 0.0
        %1473 = vmatprep.subr.mxu0 0.0
        %1474 = vmatpush1.msra.mxu0 0.0
        %1475 = vmatprep.subr.mxu0 0.0
        %1476 = vmatpush1.msra.mxu0 0.0
        %1477 = vmatprep.subr.mxu0 0.0
        %1478 = vmatpush1.msra.mxu0 0.0
        %1479 = vmatprep.subr.mxu0 0.0
        %1480 = vmatpush1.msra.mxu0 0.0
        %1481 = vmatprep.mubr.f32.mxu0 0.0
        %1482 = vmatmul.mubr.f32.gmra.mrb[0].mxu0 %v1370
        %v1483 = vpop.f32.mrb[0].mxu0
        %v1484 = vadd.f32 %v1291, %v1483
        %v1485 = vpop.f32.mrb[0].mxu0
        %1486 = vmatprep.mubr.f32.mxu0 0.0
        %1487 = vmatmul.mubr.f32.gmra.mrb[0].mxu0 %v1373
        %v1488 = vpop.f32.mrb[0].mxu0
        %v1489 = vadd.f32 %v1296, %v1488
        %v1490 = vpop.f32.mrb[0].mxu0
        %1491 = vmatprep.mubr.f32.mxu0 0.0
        %1492 = vmatmul.mubr.f32.gmra.mrb[0].mxu0 %v1376
        %v1493 = vpop.f32.mrb[0].mxu0
        %v1494 = vadd.f32 %v1301, %v1493
        %v1495 = vpop.f32.mrb[0].mxu0
        %1496 = vmatprep.mubr.f32.mxu0 0.0
        %1497 = vmatmul.mubr.f32.gmra.mrb[0].mxu0 %v1379
        %v1498 = vpop.f32.mrb[0].mxu0
        %v1499 = vadd.f32 %v1306, %v1498
        %v1500 = vpop.f32.mrb[0].mxu0
        %1501 = vmatprep.mubr.f32.mxu0 0.0
        %1502 = vmatmul.mubr.f32.gmra.mrb[0].mxu0 %v1382
        %v1503 = vpop.f32.mrb[0].mxu0
        %v1504 = vadd.f32 %v1311, %v1503
        %v1505 = vpop.f32.mrb[0].mxu0
        %1506 = vmatprep.mubr.f32.mxu0 0.0
        %1507 = vmatmul.mubr.f32.gmra.mrb[0].mxu0 %v1385
        %v1508 = vpop.f32.mrb[0].mxu0
        %v1509 = vadd.f32 %v1316, %v1508
        %v1510 = vpop.f32.mrb[0].mxu0
        %1511 = vmatprep.mubr.f32.mxu0 0.0
        %1512 = vmatmul.mubr.f32.gmra.mrb[0].mxu0 %v1388
        %v1513 = vpop.f32.mrb[0].mxu0
        %v1514 = vadd.f32 %v1321, %v1513
        %v1515 = vpop.f32.mrb[0].mxu0
        %1516 = vmatprep.mubr.f32.mxu0 0.0
        %1517 = vmatmul.mubr.f32.gmra.mrb[0].mxu0 %v1391
        %v1518 = vpop.f32.mrb[0].mxu0
        %v1519 = vadd.f32 %v1326, %v1518
        %v1520 = vpop.f32.mrb[0].mxu0
        %1521 = vmatprep.mubr.f32.mxu0 0.0
        %1522 = vmatmul.mubr.f32.gmra.mrb[0].mxu0 %v1394
        %v1523 = vpop.f32.mrb[0].mxu0
        %v1524 = vadd.f32 %v1331, %v1523
        %v1525 = vpop.f32.mrb[0].mxu0
        %1526 = vmatprep.mubr.f32.mxu0 0.0
        %1527 = vmatmul.mubr.f32.gmra.mrb[0].mxu0 %v1397
        %v1528 = vpop.f32.mrb[0].mxu0
        %v1529 = vadd.f32 %v1336, %v1528
        %v1530 = vpop.f32.mrb[0].mxu0
        %1531 = vmatprep.mubr.f32.mxu0 0.0
        %1532 = vmatmul.mubr.f32.gmra.mrb[0].mxu0 %v1400
        %v1533 = vpop.f32.mrb[0].mxu0
        %v1534 = vadd.f32 %v1341, %v1533
        %v1535 = vpop.f32.mrb[0].mxu0
        %1536 = vmatprep.mubr.f32.mxu0 0.0
        %1537 = vmatmul.mubr.f32.gmra.mrb[0].mxu0 %v1403
        %v1538 = vpop.f32.mrb[0].mxu0
        %v1539 = vadd.f32 %v1346, %v1538
        %v1540 = vpop.f32.mrb[0].mxu0
        %1541 = vmatprep.mubr.f32.mxu0 0.0
        %1542 = vmatmul.mubr.f32.gmra.mrb[0].mxu0 %v1406
        %v1543 = vpop.f32.mrb[0].mxu0
        %v1544 = vadd.f32 %v1351, %v1543
        %v1545 = vpop.f32.mrb[0].mxu0
        %1546 = vmatprep.mubr.f32.mxu0 0.0
        %1547 = vmatmul.mubr.f32.gmra.mrb[0].mxu0 %v1409
        %v1548 = vpop.f32.mrb[0].mxu0
        %v1549 = vadd.f32 %v1356, %v1548
        %v1550 = vpop.f32.mrb[0].mxu0
        %1551 = vmatprep.mubr.f32.mxu0 0.0
        %1552 = vmatmul.mubr.f32.gmra.mrb[0].mxu0 %v1412
        %v1553 = vpop.f32.mrb[0].mxu0
        %v1554 = vadd.f32 %v1361, %v1553
        %v1555 = vpop.f32.mrb[0].mxu0
        %1556 = vmatprep.mubr.f32.mxu0 0.0
        %1557 = vmatmul.mubr.f32.gmra.mrb[0].mxu0 %v1415
        %v1558 = vpop.f32.mrb[0].mxu0
        %v1559 = vadd.f32 %v1366, %v1558
        %v1560 = vpop.f32.mrb[0].mxu0
        %1561 = vdwg.mxu0
        %s1562 = scalar_lea.vmem %s0, 768
        %v1563 = vld [vmem:[%s1562] sm:$0xff]
        %v1564 = vld [vmem:[%s1562 + $0x8] sm:$0xff]
        %v1565 = vld [vmem:[%s1562 + $0x10] sm:$0xff]
        %v1566 = vld [vmem:[%s1562 + $0x18] sm:$0xff]
        %v1567 = vld [vmem:[%s1562 + $0x20] sm:$0xff]
        %v1568 = vld [vmem:[%s1562 + $0x28] sm:$0xff]
        %v1569 = vld [vmem:[%s1562 + $0x30] sm:$0xff]
        %v1570 = vld [vmem:[%s1562 + $0x38] sm:$0xff]
        %v1571 = vld [vmem:[%s1562 + $0x40] sm:$0xff]
        %v1572 = vld [vmem:[%s1562 + $0x48] sm:$0xff]
        %v1573 = vld [vmem:[%s1562 + $0x50] sm:$0xff]
        %v1574 = vld [vmem:[%s1562 + $0x58] sm:$0xff]
        %v1575 = vld [vmem:[%s1562 + $0x60] sm:$0xff]
        %v1576 = vld [vmem:[%s1562 + $0x68] sm:$0xff]
        %v1577 = vld [vmem:[%s1562 + $0x70] sm:$0xff]
        %v1578 = vld [vmem:[%s1562 + $0x78] sm:$0xff]
        %v1580 = vsel %vm297, %v1563, 0
        %v1583 = vsel %vm297, %v1564, 0
        %v1586 = vsel %vm297, %v1565, 0
        %v1589 = vsel %vm297, %v1566, 0
        %v1592 = vsel %vm297, %v1567, 0
        %v1595 = vsel %vm297, %v1568, 0
        %v1598 = vsel %vm297, %v1569, 0
        %v1601 = vsel %vm297, %v1570, 0
        %v1604 = vsel %vm297, %v1571, 0
        %v1607 = vsel %vm297, %v1572, 0
        %v1610 = vsel %vm297, %v1573, 0
        %v1613 = vsel %vm297, %v1574, 0
        %v1616 = vsel %vm297, %v1575, 0
        %v1619 = vsel %vm297, %v1576, 0
        %v1622 = vsel %vm297, %v1577, 0
        %v1625 = vsel %vm297, %v1578, 0
        %1627 = vmatprep.subr.mxu0 0.0
        %1628 = vmatpush1.msra.mxu0 %v702
        %1629 = vmatprep.subr.mxu0 0.0
        %1630 = vmatpush1.msra.mxu0 0.0
        %1631 = vmatprep.subr.mxu0 0.0
        %1632 = vmatpush1.msra.mxu0 0.0
        %1633 = vmatprep.subr.mxu0 0.0
        %1634 = vmatpush1.msra.mxu0 0.0
        %1635 = vmatprep.subr.mxu0 0.0
        %1636 = vmatpush1.msra.mxu0 0.0
        %1637 = vmatprep.subr.mxu0 0.0
        %1638 = vmatpush1.msra.mxu0 0.0
        %1639 = vmatprep.subr.mxu0 0.0
        %1640 = vmatpush1.msra.mxu0 0.0
        %1641 = vmatprep.subr.mxu0 0.0
        %1642 = vmatpush1.msra.mxu0 0.0
        %1643 = vmatprep.subr.mxu0 0.0
        %1644 = vmatpush1.msra.mxu0 0.0
        %1645 = vmatprep.subr.mxu0 0.0
        %1646 = vmatpush1.msra.mxu0 0.0
        %1647 = vmatprep.subr.mxu0 0.0
        %1648 = vmatpush1.msra.mxu0 0.0
        %1649 = vmatprep.subr.mxu0 0.0
        %1650 = vmatpush1.msra.mxu0 0.0
        %1651 = vmatprep.subr.mxu0 0.0
        %1652 = vmatpush1.msra.mxu0 0.0
        %1653 = vmatprep.subr.mxu0 0.0
        %1654 = vmatpush1.msra.mxu0 0.0
        %1655 = vmatprep.subr.mxu0 0.0
        %1656 = vmatpush1.msra.mxu0 0.0
        %1657 = vmatprep.subr.mxu0 0.0
        %1658 = vmatpush1.msra.mxu0 0.0
        %1659 = vmatprep.subr.mxu0 0.0
        %1660 = vmatpush1.msra.mxu0 0.0
        %1661 = vmatprep.subr.mxu0 0.0
        %1662 = vmatpush1.msra.mxu0 0.0
        %1663 = vmatprep.subr.mxu0 0.0
        %1664 = vmatpush1.msra.mxu0 0.0
        %1665 = vmatprep.subr.mxu0 0.0
        %1666 = vmatpush1.msra.mxu0 0.0
        %1667 = vmatprep.subr.mxu0 0.0
        %1668 = vmatpush1.msra.mxu0 0.0
        %1669 = vmatprep.subr.mxu0 0.0
        %1670 = vmatpush1.msra.mxu0 0.0
        %1671 = vmatprep.subr.mxu0 0.0
        %1672 = vmatpush1.msra.mxu0 0.0
        %1673 = vmatprep.subr.mxu0 0.0
        %1674 = vmatpush1.msra.mxu0 0.0
        %1675 = vmatprep.subr.mxu0 0.0
        %1676 = vmatpush1.msra.mxu0 0.0
        %1677 = vmatprep.subr.mxu0 0.0
        %1678 = vmatpush1.msra.mxu0 0.0
        %1679 = vmatprep.subr.mxu0 0.0
        %1680 = vmatpush1.msra.mxu0 0.0
        %1681 = vmatprep.subr.mxu0 0.0
        %1682 = vmatpush1.msra.mxu0 0.0
        %1683 = vmatprep.subr.mxu0 0.0
        %1684 = vmatpush1.msra.mxu0 0.0
        %1685 = vmatprep.subr.mxu0 0.0
        %1686 = vmatpush1.msra.mxu0 0.0
        %1687 = vmatprep.subr.mxu0 0.0
        %1688 = vmatpush1.msra.mxu0 0.0
        %1689 = vmatprep.subr.mxu0 0.0
        %1690 = vmatpush1.msra.mxu0 0.0
        %1691 = vmatprep.mubr.f32.mxu0 0.0
        %1692 = vmatmul.mubr.f32.gmra.mrb[0].mxu0 %v1580
        %v1693 = vpop.f32.mrb[0].mxu0
        %v1694 = vadd.f32 0.0, %v1693
        %v1695 = vpop.f32.mrb[0].mxu0
        %1696 = vmatprep.mubr.f32.mxu0 0.0
        %1697 = vmatmul.mubr.f32.gmra.mrb[0].mxu0 %v1583
        %v1698 = vpop.f32.mrb[0].mxu0
        %v1699 = vadd.f32 0.0, %v1698
        %v1700 = vpop.f32.mrb[0].mxu0
        %1701 = vmatprep.mubr.f32.mxu0 0.0
        %1702 = vmatmul.mubr.f32.gmra.mrb[0].mxu0 %v1586
        %v1703 = vpop.f32.mrb[0].mxu0
        %v1704 = vadd.f32 0.0, %v1703
        %v1705 = vpop.f32.mrb[0].mxu0
        %1706 = vmatprep.mubr.f32.mxu0 0.0
        %1707 = vmatmul.mubr.f32.gmra.mrb[0].mxu0 %v1589
        %v1708 = vpop.f32.mrb[0].mxu0
        %v1709 = vadd.f32 0.0, %v1708
        %v1710 = vpop.f32.mrb[0].mxu0
        %1711 = vmatprep.mubr.f32.mxu0 0.0
        %1712 = vmatmul.mubr.f32.gmra.mrb[0].mxu0 %v1592
        %v1713 = vpop.f32.mrb[0].mxu0
        %v1714 = vadd.f32 0.0, %v1713
        %v1715 = vpop.f32.mrb[0].mxu0
        %1716 = vmatprep.mubr.f32.mxu0 0.0
        %1717 = vmatmul.mubr.f32.gmra.mrb[0].mxu0 %v1595
        %v1718 = vpop.f32.mrb[0].mxu0
        %v1719 = vadd.f32 0.0, %v1718
        %v1720 = vpop.f32.mrb[0].mxu0
        %1721 = vmatprep.mubr.f32.mxu0 0.0
        %1722 = vmatmul.mubr.f32.gmra.mrb[0].mxu0 %v1598
        %v1723 = vpop.f32.mrb[0].mxu0
        %v1724 = vadd.f32 0.0, %v1723
        %v1725 = vpop.f32.mrb[0].mxu0
        %1726 = vmatprep.mubr.f32.mxu0 0.0
        %1727 = vmatmul.mubr.f32.gmra.mrb[0].mxu0 %v1601
        %v1728 = vpop.f32.mrb[0].mxu0
        %v1729 = vadd.f32 0.0, %v1728
        %v1730 = vpop.f32.mrb[0].mxu0
        %1731 = vmatprep.mubr.f32.mxu0 0.0
        %1732 = vmatmul.mubr.f32.gmra.mrb[0].mxu0 %v1604
        %v1733 = vpop.f32.mrb[0].mxu0
        %v1734 = vadd.f32 0.0, %v1733
        %v1735 = vpop.f32.mrb[0].mxu0
        %1736 = vmatprep.mubr.f32.mxu0 0.0
        %1737 = vmatmul.mubr.f32.gmra.mrb[0].mxu0 %v1607
        %v1738 = vpop.f32.mrb[0].mxu0
        %v1739 = vadd.f32 0.0, %v1738
        %v1740 = vpop.f32.mrb[0].mxu0
        %1741 = vmatprep.mubr.f32.mxu0 0.0
        %1742 = vmatmul.mubr.f32.gmra.mrb[0].mxu0 %v1610
        %v1743 = vpop.f32.mrb[0].mxu0
        %v1744 = vadd.f32 0.0, %v1743
        %v1745 = vpop.f32.mrb[0].mxu0
        %1746 = vmatprep.mubr.f32.mxu0 0.0
        %1747 = vmatmul.mubr.f32.gmra.mrb[0].mxu0 %v1613
        %v1748 = vpop.f32.mrb[0].mxu0
        %v1749 = vadd.f32 0.0, %v1748
        %v1750 = vpop.f32.mrb[0].mxu0
        %1751 = vmatprep.mubr.f32.mxu0 0.0
        %1752 = vmatmul.mubr.f32.gmra.mrb[0].mxu0 %v1616
        %v1753 = vpop.f32.mrb[0].mxu0
        %v1754 = vadd.f32 0.0, %v1753
        %v1755 = vpop.f32.mrb[0].mxu0
        %1756 = vmatprep.mubr.f32.mxu0 0.0
        %1757 = vmatmul.mubr.f32.gmra.mrb[0].mxu0 %v1619
        %v1758 = vpop.f32.mrb[0].mxu0
        %v1759 = vadd.f32 0.0, %v1758
        %v1760 = vpop.f32.mrb[0].mxu0
        %1761 = vmatprep.mubr.f32.mxu0 0.0
        %1762 = vmatmul.mubr.f32.gmra.mrb[0].mxu0 %v1622
        %v1763 = vpop.f32.mrb[0].mxu0
        %v1764 = vadd.f32 0.0, %v1763
        %v1765 = vpop.f32.mrb[0].mxu0
        %1766 = vmatprep.mubr.f32.mxu0 0.0
        %1767 = vmatmul.mubr.f32.gmra.mrb[0].mxu0 %v1625
        %v1768 = vpop.f32.mrb[0].mxu0
        %v1769 = vadd.f32 0.0, %v1768
        %v1770 = vpop.f32.mrb[0].mxu0
        %1771 = vdwg.mxu0
        %v1772 = vadd.f32 %v1484, %v1694
        %v1773 = vadd.f32 %v1489, %v1699
        %v1774 = vadd.f32 %v1494, %v1704
        %v1775 = vadd.f32 %v1499, %v1709
        %v1776 = vadd.f32 %v1504, %v1714
        %v1777 = vadd.f32 %v1509, %v1719
        %v1778 = vadd.f32 %v1514, %v1724
        %v1779 = vadd.f32 %v1519, %v1729
        %v1780 = vadd.f32 %v1524, %v1734
        %v1781 = vadd.f32 %v1529, %v1739
        %v1782 = vadd.f32 %v1534, %v1744
        %v1783 = vadd.f32 %v1539, %v1749
        %v1784 = vadd.f32 %v1544, %v1754
        %v1785 = vadd.f32 %v1549, %v1759
        %v1786 = vadd.f32 %v1554, %v1764
        %v1787 = vadd.f32 %v1559, %v1769
        %s1788 = scalar_lea.vmem %s0, 896
        %v1789 = vld [vmem:[%s1788] sm:$0xff]
        %v1790 = vld [vmem:[%s1788 + $0x8] sm:$0xff]
        %v1791 = vld [vmem:[%s1788 + $0x10] sm:$0xff]
        %v1792 = vld [vmem:[%s1788 + $0x18] sm:$0xff]
        %v1793 = vld [vmem:[%s1788 + $0x20] sm:$0xff]
        %v1794 = vld [vmem:[%s1788 + $0x28] sm:$0xff]
        %v1795 = vld [vmem:[%s1788 + $0x30] sm:$0xff]
        %v1796 = vld [vmem:[%s1788 + $0x38] sm:$0xff]
        %v1797 = vld [vmem:[%s1788 + $0x40] sm:$0xff]
        %v1798 = vld [vmem:[%s1788 + $0x48] sm:$0xff]
        %v1799 = vld [vmem:[%s1788 + $0x50] sm:$0xff]
        %v1800 = vld [vmem:[%s1788 + $0x58] sm:$0xff]
        %v1801 = vld [vmem:[%s1788 + $0x60] sm:$0xff]
        %v1802 = vld [vmem:[%s1788 + $0x68] sm:$0xff]
        %v1803 = vld [vmem:[%s1788 + $0x70] sm:$0xff]
        %v1804 = vld [vmem:[%s1788 + $0x78] sm:$0xff]
        %v1806 = vsel %vm297, %v1789, 0
        %v1809 = vsel %vm297, %v1790, 0
        %v1812 = vsel %vm297, %v1791, 0
        %v1815 = vsel %vm297, %v1792, 0
        %v1818 = vsel %vm297, %v1793, 0
        %v1821 = vsel %vm297, %v1794, 0
        %v1824 = vsel %vm297, %v1795, 0
        %v1827 = vsel %vm297, %v1796, 0
        %v1830 = vsel %vm297, %v1797, 0
        %v1833 = vsel %vm297, %v1798, 0
        %v1836 = vsel %vm297, %v1799, 0
        %v1839 = vsel %vm297, %v1800, 0
        %v1842 = vsel %vm297, %v1801, 0
        %v1845 = vsel %vm297, %v1802, 0
        %v1848 = vsel %vm297, %v1803, 0
        %v1851 = vsel %vm297, %v1804, 0
        %1853 = vmatprep.subr.mxu0 0.0
        %1854 = vmatpush1.msra.mxu0 %v930
        %1855 = vmatprep.subr.mxu0 0.0
        %1856 = vmatpush1.msra.mxu0 0.0
        %1857 = vmatprep.subr.mxu0 0.0
        %1858 = vmatpush1.msra.mxu0 0.0
        %1859 = vmatprep.subr.mxu0 0.0
        %1860 = vmatpush1.msra.mxu0 0.0
        %1861 = vmatprep.subr.mxu0 0.0
        %1862 = vmatpush1.msra.mxu0 0.0
        %1863 = vmatprep.subr.mxu0 0.0
        %1864 = vmatpush1.msra.mxu0 0.0
        %1865 = vmatprep.subr.mxu0 0.0
        %1866 = vmatpush1.msra.mxu0 0.0
        %1867 = vmatprep.subr.mxu0 0.0
        %1868 = vmatpush1.msra.mxu0 0.0
        %1869 = vmatprep.subr.mxu0 0.0
        %1870 = vmatpush1.msra.mxu0 0.0
        %1871 = vmatprep.subr.mxu0 0.0
        %1872 = vmatpush1.msra.mxu0 0.0
        %1873 = vmatprep.subr.mxu0 0.0
        %1874 = vmatpush1.msra.mxu0 0.0
        %1875 = vmatprep.subr.mxu0 0.0
        %1876 = vmatpush1.msra.mxu0 0.0
        %1877 = vmatprep.subr.mxu0 0.0
        %1878 = vmatpush1.msra.mxu0 0.0
        %1879 = vmatprep.subr.mxu0 0.0
        %1880 = vmatpush1.msra.mxu0 0.0
        %1881 = vmatprep.subr.mxu0 0.0
        %1882 = vmatpush1.msra.mxu0 0.0
        %1883 = vmatprep.subr.mxu0 0.0
        %1884 = vmatpush1.msra.mxu0 0.0
        %1885 = vmatprep.subr.mxu0 0.0
        %1886 = vmatpush1.msra.mxu0 0.0
        %1887 = vmatprep.subr.mxu0 0.0
        %1888 = vmatpush1.msra.mxu0 0.0
        %1889 = vmatprep.subr.mxu0 0.0
        %1890 = vmatpush1.msra.mxu0 0.0
        %1891 = vmatprep.subr.mxu0 0.0
        %1892 = vmatpush1.msra.mxu0 0.0
        %1893 = vmatprep.subr.mxu0 0.0
        %1894 = vmatpush1.msra.mxu0 0.0
        %1895 = vmatprep.subr.mxu0 0.0
        %1896 = vmatpush1.msra.mxu0 0.0
        %1897 = vmatprep.subr.mxu0 0.0
        %1898 = vmatpush1.msra.mxu0 0.0
        %1899 = vmatprep.subr.mxu0 0.0
        %1900 = vmatpush1.msra.mxu0 0.0
        %1901 = vmatprep.subr.mxu0 0.0
        %1902 = vmatpush1.msra.mxu0 0.0
        %1903 = vmatprep.subr.mxu0 0.0
        %1904 = vmatpush1.msra.mxu0 0.0
        %1905 = vmatprep.subr.mxu0 0.0
        %1906 = vmatpush1.msra.mxu0 0.0
        %1907 = vmatprep.subr.mxu0 0.0
        %1908 = vmatpush1.msra.mxu0 0.0
        %1909 = vmatprep.subr.mxu0 0.0
        %1910 = vmatpush1.msra.mxu0 0.0
        %1911 = vmatprep.subr.mxu0 0.0
        %1912 = vmatpush1.msra.mxu0 0.0
        %1913 = vmatprep.subr.mxu0 0.0
        %1914 = vmatpush1.msra.mxu0 0.0
        %1915 = vmatprep.subr.mxu0 0.0
        %1916 = vmatpush1.msra.mxu0 0.0
        %1917 = vmatprep.mubr.f32.mxu0 0.0
        %1918 = vmatmul.mubr.f32.gmra.mrb[0].mxu0 %v1806
        %v1919 = vpop.f32.mrb[0].mxu0
        %v1920 = vadd.f32 0.0, %v1919
        %v1921 = vpop.f32.mrb[0].mxu0
        %1922 = vmatprep.mubr.f32.mxu0 0.0
        %1923 = vmatmul.mubr.f32.gmra.mrb[0].mxu0 %v1809
        %v1924 = vpop.f32.mrb[0].mxu0
        %v1925 = vadd.f32 0.0, %v1924
        %v1926 = vpop.f32.mrb[0].mxu0
        %1927 = vmatprep.mubr.f32.mxu0 0.0
        %1928 = vmatmul.mubr.f32.gmra.mrb[0].mxu0 %v1812
        %v1929 = vpop.f32.mrb[0].mxu0
        %v1930 = vadd.f32 0.0, %v1929
        %v1931 = vpop.f32.mrb[0].mxu0
        %1932 = vmatprep.mubr.f32.mxu0 0.0
        %1933 = vmatmul.mubr.f32.gmra.mrb[0].mxu0 %v1815
        %v1934 = vpop.f32.mrb[0].mxu0
        %v1935 = vadd.f32 0.0, %v1934
        %v1936 = vpop.f32.mrb[0].mxu0
        %1937 = vmatprep.mubr.f32.mxu0 0.0
        %1938 = vmatmul.mubr.f32.gmra.mrb[0].mxu0 %v1818
        %v1939 = vpop.f32.mrb[0].mxu0
        %v1940 = vadd.f32 0.0, %v1939
        %v1941 = vpop.f32.mrb[0].mxu0
        %1942 = vmatprep.mubr.f32.mxu0 0.0
        %1943 = vmatmul.mubr.f32.gmra.mrb[0].mxu0 %v1821
        %v1944 = vpop.f32.mrb[0].mxu0
        %v1945 = vadd.f32 0.0, %v1944
        %v1946 = vpop.f32.mrb[0].mxu0
        %1947 = vmatprep.mubr.f32.mxu0 0.0
        %1948 = vmatmul.mubr.f32.gmra.mrb[0].mxu0 %v1824
        %v1949 = vpop.f32.mrb[0].mxu0
        %v1950 = vadd.f32 0.0, %v1949
        %v1951 = vpop.f32.mrb[0].mxu0
        %1952 = vmatprep.mubr.f32.mxu0 0.0
        %1953 = vmatmul.mubr.f32.gmra.mrb[0].mxu0 %v1827
        %v1954 = vpop.f32.mrb[0].mxu0
        %v1955 = vadd.f32 0.0, %v1954
        %v1956 = vpop.f32.mrb[0].mxu0
        %1957 = vmatprep.mubr.f32.mxu0 0.0
        %1958 = vmatmul.mubr.f32.gmra.mrb[0].mxu0 %v1830
        %v1959 = vpop.f32.mrb[0].mxu0
        %v1960 = vadd.f32 0.0, %v1959
        %v1961 = vpop.f32.mrb[0].mxu0
        %1962 = vmatprep.mubr.f32.mxu0 0.0
        %1963 = vmatmul.mubr.f32.gmra.mrb[0].mxu0 %v1833
        %v1964 = vpop.f32.mrb[0].mxu0
        %v1965 = vadd.f32 0.0, %v1964
        %v1966 = vpop.f32.mrb[0].mxu0
        %1967 = vmatprep.mubr.f32.mxu0 0.0
        %1968 = vmatmul.mubr.f32.gmra.mrb[0].mxu0 %v1836
        %v1969 = vpop.f32.mrb[0].mxu0
        %v1970 = vadd.f32 0.0, %v1969
        %v1971 = vpop.f32.mrb[0].mxu0
        %1972 = vmatprep.mubr.f32.mxu0 0.0
        %1973 = vmatmul.mubr.f32.gmra.mrb[0].mxu0 %v1839
        %v1974 = vpop.f32.mrb[0].mxu0
        %v1975 = vadd.f32 0.0, %v1974
        %v1976 = vpop.f32.mrb[0].mxu0
        %1977 = vmatprep.mubr.f32.mxu0 0.0
        %1978 = vmatmul.mubr.f32.gmra.mrb[0].mxu0 %v1842
        %v1979 = vpop.f32.mrb[0].mxu0
        %v1980 = vadd.f32 0.0, %v1979
        %v1981 = vpop.f32.mrb[0].mxu0
        %1982 = vmatprep.mubr.f32.mxu0 0.0
        %1983 = vmatmul.mubr.f32.gmra.mrb[0].mxu0 %v1845
        %v1984 = vpop.f32.mrb[0].mxu0
        %v1985 = vadd.f32 0.0, %v1984
        %v1986 = vpop.f32.mrb[0].mxu0
        %1987 = vmatprep.mubr.f32.mxu0 0.0
        %1988 = vmatmul.mubr.f32.gmra.mrb[0].mxu0 %v1848
        %v1989 = vpop.f32.mrb[0].mxu0
        %v1990 = vadd.f32 0.0, %v1989
        %v1991 = vpop.f32.mrb[0].mxu0
        %1992 = vmatprep.mubr.f32.mxu0 0.0
        %1993 = vmatmul.mubr.f32.gmra.mrb[0].mxu0 %v1851
        %v1994 = vpop.f32.mrb[0].mxu0
        %v1995 = vadd.f32 0.0, %v1994
        %v1996 = vpop.f32.mrb[0].mxu0
        %1997 = vdwg.mxu0
        %v1998 = vadd.f32 %v1772, %v1920
        %v1999 = vadd.f32 %v1773, %v1925
        %v2000 = vadd.f32 %v1774, %v1930
        %v2001 = vadd.f32 %v1775, %v1935
        %v2002 = vadd.f32 %v1776, %v1940
        %v2003 = vadd.f32 %v1777, %v1945
        %v2004 = vadd.f32 %v1778, %v1950
        %v2005 = vadd.f32 %v1779, %v1955
        %v2006 = vadd.f32 %v1780, %v1960
        %v2007 = vadd.f32 %v1781, %v1965
        %v2008 = vadd.f32 %v1782, %v1970
        %v2009 = vadd.f32 %v1783, %v1975
        %v2010 = vadd.f32 %v1784, %v1980
        %v2011 = vadd.f32 %v1785, %v1985
        %v2012 = vadd.f32 %v1786, %v1990
        %v2013 = vadd.f32 %v1787, %v1995
        %s2014 = scalar_lea.vmem %s1, 16
        %v2015 = vld [vmem:[%s2014] sm:$0xff]
        %v2016 = vld [vmem:[%s2014 + $0x8] sm:$0xff]
        %vm2017 = vcmask 130048
        %v2019 = vsel %vm2017, %v1998, 0
        %v2022 = vsel %vm2017, %v1999, 0
        %v2025 = vsel %vm2017, %v2000, 0
        %v2028 = vsel %vm2017, %v2001, 0
        %v2031 = vsel %vm2017, %v2002, 0
        %v2034 = vsel %vm2017, %v2003, 0
        %v2037 = vsel %vm2017, %v2004, 0
        %v2040 = vsel %vm2017, %v2005, 0
        %v2043 = vsel %vm2017, %v2006, 0
        %v2046 = vsel %vm2017, %v2007, 0
        %v2049 = vsel %vm2017, %v2008, 0
        %v2052 = vsel %vm2017, %v2009, 0
        %v2055 = vsel %vm2017, %v2010, 0
        %v2058 = vsel %vm2017, %v2011, 0
        %v2061 = vsel %vm2017, %v2012, 0
        %v2064 = vsel %vm2017, %v2013, 0
        %2066 = vmatprep.subr.mxu0 0.0
        %2067 = vmatpush1.msra.mxu0 %v2015
        %2068 = vmatprep.subr.mxu0 0.0
        %2069 = vmatpush1.msra.mxu0 %v2016
        %2070 = vmatprep.subr.mxu0 0.0
        %2071 = vmatpush1.msra.mxu0 0.0
        %2072 = vmatprep.subr.mxu0 0.0
        %2073 = vmatpush1.msra.mxu0 0.0
        %2074 = vmatprep.subr.mxu0 0.0
        %2075 = vmatpush1.msra.mxu0 0.0
        %2076 = vmatprep.subr.mxu0 0.0
        %2077 = vmatpush1.msra.mxu0 0.0
        %2078 = vmatprep.subr.mxu0 0.0
        %2079 = vmatpush1.msra.mxu0 0.0
        %2080 = vmatprep.subr.mxu0 0.0
        %2081 = vmatpush1.msra.mxu0 0.0
        %2082 = vmatprep.subr.mxu0 0.0
        %2083 = vmatpush1.msra.mxu0 0.0
        %2084 = vmatprep.subr.mxu0 0.0
        %2085 = vmatpush1.msra.mxu0 0.0
        %2086 = vmatprep.subr.mxu0 0.0
        %2087 = vmatpush1.msra.mxu0 0.0
        %2088 = vmatprep.subr.mxu0 0.0
        %2089 = vmatpush1.msra.mxu0 0.0
        %2090 = vmatprep.subr.mxu0 0.0
        %2091 = vmatpush1.msra.mxu0 0.0
        %2092 = vmatprep.subr.mxu0 0.0
        %2093 = vmatpush1.msra.mxu0 0.0
        %2094 = vmatprep.subr.mxu0 0.0
        %2095 = vmatpush1.msra.mxu0 0.0
        %2096 = vmatprep.subr.mxu0 0.0
        %2097 = vmatpush1.msra.mxu0 0.0
        %2098 = vmatprep.subr.mxu0 0.0
        %2099 = vmatpush1.msra.mxu0 0.0
        %2100 = vmatprep.subr.mxu0 0.0
        %2101 = vmatpush1.msra.mxu0 0.0
        %2102 = vmatprep.subr.mxu0 0.0
        %2103 = vmatpush1.msra.mxu0 0.0
        %2104 = vmatprep.subr.mxu0 0.0
        %2105 = vmatpush1.msra.mxu0 0.0
        %2106 = vmatprep.subr.mxu0 0.0
        %2107 = vmatpush1.msra.mxu0 0.0
        %2108 = vmatprep.subr.mxu0 0.0
        %2109 = vmatpush1.msra.mxu0 0.0
        %2110 = vmatprep.subr.mxu0 0.0
        %2111 = vmatpush1.msra.mxu0 0.0
        %2112 = vmatprep.subr.mxu0 0.0
        %2113 = vmatpush1.msra.mxu0 0.0
        %2114 = vmatprep.subr.mxu0 0.0
        %2115 = vmatpush1.msra.mxu0 0.0
        %2116 = vmatprep.subr.mxu0 0.0
        %2117 = vmatpush1.msra.mxu0 0.0
        %2118 = vmatprep.subr.mxu0 0.0
        %2119 = vmatpush1.msra.mxu0 0.0
        %2120 = vmatprep.subr.mxu0 0.0
        %2121 = vmatpush1.msra.mxu0 0.0
        %2122 = vmatprep.subr.mxu0 0.0
        %2123 = vmatpush1.msra.mxu0 0.0
        %2124 = vmatprep.subr.mxu0 0.0
        %2125 = vmatpush1.msra.mxu0 0.0
        %2126 = vmatprep.subr.mxu0 0.0
        %2127 = vmatpush1.msra.mxu0 0.0
        %2128 = vmatprep.subr.mxu0 0.0
        %2129 = vmatpush1.msra.mxu0 0.0
        %2130 = vmatprep.mubr.f32.mxu0 0.0
        %2131 = vmatmul.mubr.f32.gmra.mrb[0].mxu0 %v2019
        %v2132 = vpop.f32.mrb[0].mxu0
        %v2133 = vadd.f32 0.0, %v2132
        %v2134 = vpop.f32.mrb[0].mxu0
        %2135 = vmatprep.mubr.f32.mxu0 0.0
        %2136 = vmatmul.mubr.f32.gmra.mrb[0].mxu0 %v2022
        %v2137 = vpop.f32.mrb[0].mxu0
        %v2138 = vadd.f32 0.0, %v2137
        %v2139 = vpop.f32.mrb[0].mxu0
        %2140 = vmatprep.mubr.f32.mxu0 0.0
        %2141 = vmatmul.mubr.f32.gmra.mrb[0].mxu0 %v2025
        %v2142 = vpop.f32.mrb[0].mxu0
        %v2143 = vadd.f32 0.0, %v2142
        %v2144 = vpop.f32.mrb[0].mxu0
        %2145 = vmatprep.mubr.f32.mxu0 0.0
        %2146 = vmatmul.mubr.f32.gmra.mrb[0].mxu0 %v2028
        %v2147 = vpop.f32.mrb[0].mxu0
        %v2148 = vadd.f32 0.0, %v2147
        %v2149 = vpop.f32.mrb[0].mxu0
        %2150 = vmatprep.mubr.f32.mxu0 0.0
        %2151 = vmatmul.mubr.f32.gmra.mrb[0].mxu0 %v2031
        %v2152 = vpop.f32.mrb[0].mxu0
        %v2153 = vadd.f32 0.0, %v2152
        %v2154 = vpop.f32.mrb[0].mxu0
        %2155 = vmatprep.mubr.f32.mxu0 0.0
        %2156 = vmatmul.mubr.f32.gmra.mrb[0].mxu0 %v2034
        %v2157 = vpop.f32.mrb[0].mxu0
        %v2158 = vadd.f32 0.0, %v2157
        %v2159 = vpop.f32.mrb[0].mxu0
        %2160 = vmatprep.mubr.f32.mxu0 0.0
        %2161 = vmatmul.mubr.f32.gmra.mrb[0].mxu0 %v2037
        %v2162 = vpop.f32.mrb[0].mxu0
        %v2163 = vadd.f32 0.0, %v2162
        %v2164 = vpop.f32.mrb[0].mxu0
        %2165 = vmatprep.mubr.f32.mxu0 0.0
        %2166 = vmatmul.mubr.f32.gmra.mrb[0].mxu0 %v2040
        %v2167 = vpop.f32.mrb[0].mxu0
        %v2168 = vadd.f32 0.0, %v2167
        %v2169 = vpop.f32.mrb[0].mxu0
        %2170 = vmatprep.mubr.f32.mxu0 0.0
        %2171 = vmatmul.mubr.f32.gmra.mrb[0].mxu0 %v2043
        %v2172 = vpop.f32.mrb[0].mxu0
        %v2173 = vadd.f32 0.0, %v2172
        %v2174 = vpop.f32.mrb[0].mxu0
        %2175 = vmatprep.mubr.f32.mxu0 0.0
        %2176 = vmatmul.mubr.f32.gmra.mrb[0].mxu0 %v2046
        %v2177 = vpop.f32.mrb[0].mxu0
        %v2178 = vadd.f32 0.0, %v2177
        %v2179 = vpop.f32.mrb[0].mxu0
        %2180 = vmatprep.mubr.f32.mxu0 0.0
        %2181 = vmatmul.mubr.f32.gmra.mrb[0].mxu0 %v2049
        %v2182 = vpop.f32.mrb[0].mxu0
        %v2183 = vadd.f32 0.0, %v2182
        %v2184 = vpop.f32.mrb[0].mxu0
        %2185 = vmatprep.mubr.f32.mxu0 0.0
        %2186 = vmatmul.mubr.f32.gmra.mrb[0].mxu0 %v2052
        %v2187 = vpop.f32.mrb[0].mxu0
        %v2188 = vadd.f32 0.0, %v2187
        %v2189 = vpop.f32.mrb[0].mxu0
        %2190 = vmatprep.mubr.f32.mxu0 0.0
        %2191 = vmatmul.mubr.f32.gmra.mrb[0].mxu0 %v2055
        %v2192 = vpop.f32.mrb[0].mxu0
        %v2193 = vadd.f32 0.0, %v2192
        %v2194 = vpop.f32.mrb[0].mxu0
        %2195 = vmatprep.mubr.f32.mxu0 0.0
        %2196 = vmatmul.mubr.f32.gmra.mrb[0].mxu0 %v2058
        %v2197 = vpop.f32.mrb[0].mxu0
        %v2198 = vadd.f32 0.0, %v2197
        %v2199 = vpop.f32.mrb[0].mxu0
        %2200 = vmatprep.mubr.f32.mxu0 0.0
        %2201 = vmatmul.mubr.f32.gmra.mrb[0].mxu0 %v2061
        %v2202 = vpop.f32.mrb[0].mxu0
        %v2203 = vadd.f32 0.0, %v2202
        %v2204 = vpop.f32.mrb[0].mxu0
        %2205 = vmatprep.mubr.f32.mxu0 0.0
        %2206 = vmatmul.mubr.f32.gmra.mrb[0].mxu0 %v2064
        %v2207 = vpop.f32.mrb[0].mxu0
        %v2208 = vadd.f32 0.0, %v2207
        %v2209 = vpop.f32.mrb[0].mxu0
        %2210 = vdwg.mxu0
        %v2212 = vsel %vm2017, %v1124, 0
        %v2215 = vsel %vm2017, %v1125, 0
        %v2218 = vsel %vm2017, %v1126, 0
        %v2221 = vsel %vm2017, %v1127, 0
        %v2224 = vsel %vm2017, %v1128, 0
        %v2227 = vsel %vm2017, %v1129, 0
        %v2230 = vsel %vm2017, %v1130, 0
        %v2233 = vsel %vm2017, %v1131, 0
        %v2236 = vsel %vm2017, %v1132, 0
        %v2239 = vsel %vm2017, %v1133, 0
        %v2242 = vsel %vm2017, %v1134, 0
        %v2245 = vsel %vm2017, %v1135, 0
        %v2248 = vsel %vm2017, %v1136, 0
        %v2251 = vsel %vm2017, %v1137, 0
        %v2254 = vsel %vm2017, %v1138, 0
        %v2257 = vsel %vm2017, %v1139, 0
        %2259 = vmatprep.subr.mxu0 0.0
        %2260 = vmatpush1.msra.mxu0 %v1140
        %2261 = vmatprep.subr.mxu0 0.0
        %2262 = vmatpush1.msra.mxu0 %v1141
        %2263 = vmatprep.subr.mxu0 0.0
        %2264 = vmatpush1.msra.mxu0 0.0
        %2265 = vmatprep.subr.mxu0 0.0
        %2266 = vmatpush1.msra.mxu0 0.0
        %2267 = vmatprep.subr.mxu0 0.0
        %2268 = vmatpush1.msra.mxu0 0.0
        %2269 = vmatprep.subr.mxu0 0.0
        %2270 = vmatpush1.msra.mxu0 0.0
        %2271 = vmatprep.subr.mxu0 0.0
        %2272 = vmatpush1.msra.mxu0 0.0
        %2273 = vmatprep.subr.mxu0 0.0
        %2274 = vmatpush1.msra.mxu0 0.0
        %2275 = vmatprep.subr.mxu0 0.0
        %2276 = vmatpush1.msra.mxu0 0.0
        %2277 = vmatprep.subr.mxu0 0.0
        %2278 = vmatpush1.msra.mxu0 0.0
        %2279 = vmatprep.subr.mxu0 0.0
        %2280 = vmatpush1.msra.mxu0 0.0
        %2281 = vmatprep.subr.mxu0 0.0
        %2282 = vmatpush1.msra.mxu0 0.0
        %2283 = vmatprep.subr.mxu0 0.0
        %2284 = vmatpush1.msra.mxu0 0.0
        %2285 = vmatprep.subr.mxu0 0.0
        %2286 = vmatpush1.msra.mxu0 0.0
        %2287 = vmatprep.subr.mxu0 0.0
        %2288 = vmatpush1.msra.mxu0 0.0
        %2289 = vmatprep.subr.mxu0 0.0
        %2290 = vmatpush1.msra.mxu0 0.0
        %2291 = vmatprep.subr.mxu0 0.0
        %2292 = vmatpush1.msra.mxu0 0.0
        %2293 = vmatprep.subr.mxu0 0.0
        %2294 = vmatpush1.msra.mxu0 0.0
        %2295 = vmatprep.subr.mxu0 0.0
        %2296 = vmatpush1.msra.mxu0 0.0
        %2297 = vmatprep.subr.mxu0 0.0
        %2298 = vmatpush1.msra.mxu0 0.0
        %2299 = vmatprep.subr.mxu0 0.0
        %2300 = vmatpush1.msra.mxu0 0.0
        %2301 = vmatprep.subr.mxu0 0.0
        %2302 = vmatpush1.msra.mxu0 0.0
        %2303 = vmatprep.subr.mxu0 0.0
        %2304 = vmatpush1.msra.mxu0 0.0
        %2305 = vmatprep.subr.mxu0 0.0
        %2306 = vmatpush1.msra.mxu0 0.0
        %2307 = vmatprep.subr.mxu0 0.0
        %2308 = vmatpush1.msra.mxu0 0.0
        %2309 = vmatprep.subr.mxu0 0.0
        %2310 = vmatpush1.msra.mxu0 0.0
        %2311 = vmatprep.subr.mxu0 0.0
        %2312 = vmatpush1.msra.mxu0 0.0
        %2313 = vmatprep.subr.mxu0 0.0
        %2314 = vmatpush1.msra.mxu0 0.0
        %2315 = vmatprep.subr.mxu0 0.0
        %2316 = vmatpush1.msra.mxu0 0.0
        %2317 = vmatprep.subr.mxu0 0.0
        %2318 = vmatpush1.msra.mxu0 0.0
        %2319 = vmatprep.subr.mxu0 0.0
        %2320 = vmatpush1.msra.mxu0 0.0
        %2321 = vmatprep.subr.mxu0 0.0
        %2322 = vmatpush1.msra.mxu0 0.0
        %2323 = vmatprep.mubr.f32.mxu0 0.0
        %2324 = vmatmul.mubr.f32.gmra.mrb[0].mxu0 %v2212
        %v2325 = vpop.f32.mrb[0].mxu0
        %v2326 = vadd.f32 %v2133, %v2325
        %v2327 = vpop.f32.mrb[0].mxu0
        %2328 = vmatprep.mubr.f32.mxu0 0.0
        %2329 = vmatmul.mubr.f32.gmra.mrb[0].mxu0 %v2215
        %v2330 = vpop.f32.mrb[0].mxu0
        %v2331 = vadd.f32 %v2138, %v2330
        %v2332 = vpop.f32.mrb[0].mxu0
        %2333 = vmatprep.mubr.f32.mxu0 0.0
        %2334 = vmatmul.mubr.f32.gmra.mrb[0].mxu0 %v2218
        %v2335 = vpop.f32.mrb[0].mxu0
        %v2336 = vadd.f32 %v2143, %v2335
        %v2337 = vpop.f32.mrb[0].mxu0
        %2338 = vmatprep.mubr.f32.mxu0 0.0
        %2339 = vmatmul.mubr.f32.gmra.mrb[0].mxu0 %v2221
        %v2340 = vpop.f32.mrb[0].mxu0
        %v2341 = vadd.f32 %v2148, %v2340
        %v2342 = vpop.f32.mrb[0].mxu0
        %2343 = vmatprep.mubr.f32.mxu0 0.0
        %2344 = vmatmul.mubr.f32.gmra.mrb[0].mxu0 %v2224
        %v2345 = vpop.f32.mrb[0].mxu0
        %v2346 = vadd.f32 %v2153, %v2345
        %v2347 = vpop.f32.mrb[0].mxu0
        %2348 = vmatprep.mubr.f32.mxu0 0.0
        %2349 = vmatmul.mubr.f32.gmra.mrb[0].mxu0 %v2227
        %v2350 = vpop.f32.mrb[0].mxu0
        %v2351 = vadd.f32 %v2158, %v2350
        %v2352 = vpop.f32.mrb[0].mxu0
        %2353 = vmatprep.mubr.f32.mxu0 0.0
        %2354 = vmatmul.mubr.f32.gmra.mrb[0].mxu0 %v2230
        %v2355 = vpop.f32.mrb[0].mxu0
        %v2356 = vadd.f32 %v2163, %v2355
        %v2357 = vpop.f32.mrb[0].mxu0
        %2358 = vmatprep.mubr.f32.mxu0 0.0
        %2359 = vmatmul.mubr.f32.gmra.mrb[0].mxu0 %v2233
        %v2360 = vpop.f32.mrb[0].mxu0
        %v2361 = vadd.f32 %v2168, %v2360
        %v2362 = vpop.f32.mrb[0].mxu0
        %2363 = vmatprep.mubr.f32.mxu0 0.0
        %2364 = vmatmul.mubr.f32.gmra.mrb[0].mxu0 %v2236
        %v2365 = vpop.f32.mrb[0].mxu0
        %v2366 = vadd.f32 %v2173, %v2365
        %v2367 = vpop.f32.mrb[0].mxu0
        %2368 = vmatprep.mubr.f32.mxu0 0.0
        %2369 = vmatmul.mubr.f32.gmra.mrb[0].mxu0 %v2239
        %v2370 = vpop.f32.mrb[0].mxu0
        %v2371 = vadd.f32 %v2178, %v2370
        %v2372 = vpop.f32.mrb[0].mxu0
        %2373 = vmatprep.mubr.f32.mxu0 0.0
        %2374 = vmatmul.mubr.f32.gmra.mrb[0].mxu0 %v2242
        %v2375 = vpop.f32.mrb[0].mxu0
        %v2376 = vadd.f32 %v2183, %v2375
        %v2377 = vpop.f32.mrb[0].mxu0
        %2378 = vmatprep.mubr.f32.mxu0 0.0
        %2379 = vmatmul.mubr.f32.gmra.mrb[0].mxu0 %v2245
        %v2380 = vpop.f32.mrb[0].mxu0
        %v2381 = vadd.f32 %v2188, %v2380
        %v2382 = vpop.f32.mrb[0].mxu0
        %2383 = vmatprep.mubr.f32.mxu0 0.0
        %2384 = vmatmul.mubr.f32.gmra.mrb[0].mxu0 %v2248
        %v2385 = vpop.f32.mrb[0].mxu0
        %v2386 = vadd.f32 %v2193, %v2385
        %v2387 = vpop.f32.mrb[0].mxu0
        %2388 = vmatprep.mubr.f32.mxu0 0.0
        %2389 = vmatmul.mubr.f32.gmra.mrb[0].mxu0 %v2251
        %v2390 = vpop.f32.mrb[0].mxu0
        %v2391 = vadd.f32 %v2198, %v2390
        %v2392 = vpop.f32.mrb[0].mxu0
        %2393 = vmatprep.mubr.f32.mxu0 0.0
        %2394 = vmatmul.mubr.f32.gmra.mrb[0].mxu0 %v2254
        %v2395 = vpop.f32.mrb[0].mxu0
        %v2396 = vadd.f32 %v2203, %v2395
        %v2397 = vpop.f32.mrb[0].mxu0
        %2398 = vmatprep.mubr.f32.mxu0 0.0
        %2399 = vmatmul.mubr.f32.gmra.mrb[0].mxu0 %v2257
        %v2400 = vpop.f32.mrb[0].mxu0
        %v2401 = vadd.f32 %v2208, %v2400
        %v2402 = vpop.f32.mrb[0].mxu0
        %2403 = vdwg.mxu0
        %v2404 = vld [vmem:[%s2] sm:$0xff]
        %v2405 = vld [vmem:[%s2 + $0x8] sm:$0xff]
        %v2406 = vld [vmem:[%s2 + $0x10] sm:$0xff]
        %v2407 = vld [vmem:[%s2 + $0x18] sm:$0xff]
        %v2408 = vld [vmem:[%s2 + $0x20] sm:$0xff]
        %v2409 = vld [vmem:[%s2 + $0x28] sm:$0xff]
        %v2410 = vld [vmem:[%s2 + $0x30] sm:$0xff]
        %v2411 = vld [vmem:[%s2 + $0x38] sm:$0xff]
        %v2412 = vld [vmem:[%s2 + $0x40] sm:$0xff]
        %v2413 = vld [vmem:[%s2 + $0x48] sm:$0xff]
        %v2414 = vld [vmem:[%s2 + $0x50] sm:$0xff]
        %v2415 = vld [vmem:[%s2 + $0x58] sm:$0xff]
        %v2416 = vld [vmem:[%s2 + $0x60] sm:$0xff]
        %v2417 = vld [vmem:[%s2 + $0x68] sm:$0xff]
        %v2418 = vld [vmem:[%s2 + $0x70] sm:$0xff]
        %v2419 = vld [vmem:[%s2 + $0x78] sm:$0xff]
        %2421 = vset.pattern.permute.xlu0 0
        %2422 = vperm.xlu0 %2421, %v2404
        %v2423 = vpop.permute.xlu0 %2422
        %2426 = vset.pattern.permute.xlu0 0
        %2427 = vperm.xlu0 %2426, %v2405
        %v2428 = vpop.permute.xlu0 %2427
        %2431 = vset.pattern.permute.xlu0 0
        %2432 = vperm.xlu0 %2431, %v2406
        %v2433 = vpop.permute.xlu0 %2432
        %2436 = vset.pattern.permute.xlu0 0
        %2437 = vperm.xlu0 %2436, %v2407
        %v2438 = vpop.permute.xlu0 %2437
        %2441 = vset.pattern.permute.xlu0 0
        %2442 = vperm.xlu0 %2441, %v2408
        %v2443 = vpop.permute.xlu0 %2442
        %2446 = vset.pattern.permute.xlu0 0
        %2447 = vperm.xlu0 %2446, %v2409
        %v2448 = vpop.permute.xlu0 %2447
        %2451 = vset.pattern.permute.xlu0 0
        %2452 = vperm.xlu0 %2451, %v2410
        %v2453 = vpop.permute.xlu0 %2452
        %2456 = vset.pattern.permute.xlu0 0
        %2457 = vperm.xlu0 %2456, %v2411
        %v2458 = vpop.permute.xlu0 %2457
        %2461 = vset.pattern.permute.xlu0 0
        %2462 = vperm.xlu0 %2461, %v2412
        %v2463 = vpop.permute.xlu0 %2462
        %2466 = vset.pattern.permute.xlu0 0
        %2467 = vperm.xlu0 %2466, %v2413
        %v2468 = vpop.permute.xlu0 %2467
        %2471 = vset.pattern.permute.xlu0 0
        %2472 = vperm.xlu0 %2471, %v2414
        %v2473 = vpop.permute.xlu0 %2472
        %2476 = vset.pattern.permute.xlu0 0
        %2477 = vperm.xlu0 %2476, %v2415
        %v2478 = vpop.permute.xlu0 %2477
        %2481 = vset.pattern.permute.xlu0 0
        %2482 = vperm.xlu0 %2481, %v2416
        %v2483 = vpop.permute.xlu0 %2482
        %2486 = vset.pattern.permute.xlu0 0
        %2487 = vperm.xlu0 %2486, %v2417
        %v2488 = vpop.permute.xlu0 %2487
        %2491 = vset.pattern.permute.xlu0 0
        %2492 = vperm.xlu0 %2491, %v2418
        %v2493 = vpop.permute.xlu0 %2492
        %2496 = vset.pattern.permute.xlu0 0
        %2497 = vperm.xlu0 %2496, %v2419
        %v2498 = vpop.permute.xlu0 %2497
        %v2500 = vadd.f32 %v2326, %v2423
        %v2501 = vadd.f32 %v2331, %v2428
        %v2502 = vadd.f32 %v2336, %v2433
        %v2503 = vadd.f32 %v2341, %v2438
        %v2504 = vadd.f32 %v2346, %v2443
        %v2505 = vadd.f32 %v2351, %v2448
        %v2506 = vadd.f32 %v2356, %v2453
        %v2507 = vadd.f32 %v2361, %v2458
        %v2508 = vadd.f32 %v2366, %v2463
        %v2509 = vadd.f32 %v2371, %v2468
        %v2510 = vadd.f32 %v2376, %v2473
        %v2511 = vadd.f32 %v2381, %v2478
        %v2512 = vadd.f32 %v2386, %v2483
        %v2513 = vadd.f32 %v2391, %v2488
        %v2514 = vadd.f32 %v2396, %v2493
        %v2515 = vadd.f32 %v2401, %v2498
        %vm2516 = vcmp.ge.f32.partialorder %v2500, 0.0
        %vm2517 = vcmp.ge.f32.partialorder %v2501, 0.0
        %vm2518 = vcmp.ge.f32.partialorder %v2502, 0.0
        %vm2519 = vcmp.ge.f32.partialorder %v2503, 0.0
        %vm2520 = vcmp.ge.f32.partialorder %v2504, 0.0
        %vm2521 = vcmp.ge.f32.partialorder %v2505, 0.0
        %vm2522 = vcmp.ge.f32.partialorder %v2506, 0.0
        %vm2523 = vcmp.ge.f32.partialorder %v2507, 0.0
        %vm2524 = vcmp.ge.f32.partialorder %v2508, 0.0
        %vm2525 = vcmp.ge.f32.partialorder %v2509, 0.0
        %vm2526 = vcmp.ge.f32.partialorder %v2510, 0.0
        %vm2527 = vcmp.ge.f32.partialorder %v2511, 0.0
        %vm2528 = vcmp.ge.f32.partialorder %v2512, 0.0
        %vm2529 = vcmp.ge.f32.partialorder %v2513, 0.0
        %vm2530 = vcmp.ge.f32.partialorder %v2514, 0.0
        %vm2531 = vcmp.ge.f32.partialorder %v2515, 0.0
        %v2532 = vmul.f32 %v2500, 0.01
        %v2533 = vmul.f32 %v2501, 0.01
        %v2534 = vmul.f32 %v2502, 0.01
        %v2535 = vmul.f32 %v2503, 0.01
        %v2536 = vmul.f32 %v2504, 0.01
        %v2537 = vmul.f32 %v2505, 0.01
        %v2538 = vmul.f32 %v2506, 0.01
        %v2539 = vmul.f32 %v2507, 0.01
        %v2540 = vmul.f32 %v2508, 0.01
        %v2541 = vmul.f32 %v2509, 0.01
        %v2542 = vmul.f32 %v2510, 0.01
        %v2543 = vmul.f32 %v2511, 0.01
        %v2544 = vmul.f32 %v2512, 0.01
        %v2545 = vmul.f32 %v2513, 0.01
        %v2546 = vmul.f32 %v2514, 0.01
        %v2547 = vmul.f32 %v2515, 0.01
        %v2548 = vsel %vm2516, %v2500, %v2532
        %v2549 = vsel %vm2517, %v2501, %v2533
        %v2550 = vsel %vm2518, %v2502, %v2534
        %v2551 = vsel %vm2519, %v2503, %v2535
        %v2552 = vsel %vm2520, %v2504, %v2536
        %v2553 = vsel %vm2521, %v2505, %v2537
        %v2554 = vsel %vm2522, %v2506, %v2538
        %v2555 = vsel %vm2523, %v2507, %v2539
        %v2556 = vsel %vm2524, %v2508, %v2540
        %v2557 = vsel %vm2525, %v2509, %v2541
        %v2558 = vsel %vm2526, %v2510, %v2542
        %v2559 = vsel %vm2527, %v2511, %v2543
        %v2560 = vsel %vm2528, %v2512, %v2544
        %v2561 = vsel %vm2529, %v2513, %v2545
        %v2562 = vsel %vm2530, %v2514, %v2546
        %v2563 = vsel %vm2531, %v2515, %v2547
        %vm2564 = vcmask 261120
        %2565 = vst.msk [vmem:[%s259] sm:$0xff] %vm2564, %v2548
        %2566 = vst.msk [vmem:[%s259 + $0x8] sm:$0xff] %vm2564, %v2549
        %2567 = vst.msk [vmem:[%s259 + $0x10] sm:$0xff] %vm2564, %v2550
        %2568 = vst.msk [vmem:[%s259 + $0x18] sm:$0xff] %vm2564, %v2551
        %2569 = vst.msk [vmem:[%s259 + $0x20] sm:$0xff] %vm2564, %v2552
        %2570 = vst.msk [vmem:[%s259 + $0x28] sm:$0xff] %vm2564, %v2553
        %2571 = vst.msk [vmem:[%s259 + $0x30] sm:$0xff] %vm2564, %v2554
        %2572 = vst.msk [vmem:[%s259 + $0x38] sm:$0xff] %vm2564, %v2555
        %2573 = vst.msk [vmem:[%s259 + $0x40] sm:$0xff] %vm2564, %v2556
        %2574 = vst.msk [vmem:[%s259 + $0x48] sm:$0xff] %vm2564, %v2557
        %2575 = vst.msk [vmem:[%s259 + $0x50] sm:$0xff] %vm2564, %v2558
        %2576 = vst.msk [vmem:[%s259 + $0x58] sm:$0xff] %vm2564, %v2559
        %2577 = vst.msk [vmem:[%s259 + $0x60] sm:$0xff] %vm2564, %v2560
        %2578 = vst.msk [vmem:[%s259 + $0x68] sm:$0xff] %vm2564, %v2561
        %2579 = vst.msk [vmem:[%s259 + $0x70] sm:$0xff] %vm2564, %v2562
        %2580 = vst.msk [vmem:[%s259 + $0x78] sm:$0xff] %vm2564, %v2563
        %s2581 = sand.u32 %s131, 1
        %s2582 = scalar_lea.sflag [#allocation4], %s2581
        %s2583 = sand.u32 %s131, 1
        %s2584 = smul.addr %s2583, 128
        %s2585 = scalar_lea.vmem [#allocation3], %s2584
        // Predicated region
        $region75: #{deconv_forward.1} parent=69 // pred_check
          %p2586 = pneg %p141
        $region76: #{deconv_forward.1} parent=69 // pred_check_branch
          %2588 = sbr.rel (%p2586) target = $region78
        $region77: #{deconv_forward.1} parent=69 // pred_region
          #allocation6 [shape = 'u32[6]{0}', space=smem, size = 0x18, scoped, tag = 'DMA stride descriptor']
          %s2589 = smul.u32 2, %s23
          %s2591 = ssub.s32 2048, 2048
          %2592 = vsyncadd %s2582, %s2591
          %s2593 = smul.addr %s22, 32
          %s2594 = sadd.s32 %s2589, %s2593
          %s2595 = smul.addr %s2594, 128
          %s2596 = scalar_lea.hbm %s4, %s2595
          %s2598 = sshll.u32 1, 14
          %s2599 = sxor.u32 4294967295, %s2598
          %s2602 = sshll.u32 7, 18
          %s2603 = sxor.u32 4294967295, %s2602
          %s2604 = sand.u32 0, %s2603
          %s2606 = sor.u32 %s2604, 0
          %s2608 = sshll.u32 3, 24
          %s2609 = sxor.u32 4294967295, %s2608
          %s2610 = sand.u32 %s2606, %s2609
          %s2612 = sor.u32 %s2610, 0
          %s2613 = sshll.u32 %s2585, 4
          %s2614 = int_to_ptr.vmem [resolvable:$true] %s2613
          %2620 = sst [smem:[#allocation6]] 256
          %s2621 = scalar_lea.smem [#allocation6], 1
          %2622 = sst [smem:[%s2621]] 512
          %s2623 = scalar_lea.smem [#allocation6], 2
          %2624 = sst [smem:[%s2623]] 2
          %s2625 = scalar_lea.smem [#allocation6], 3
          %2626 = sst [smem:[%s2625]] 128
          %s2627 = scalar_lea.smem [#allocation6], 4
          %2628 = sst [smem:[%s2627]] 128
          %s2629 = scalar_lea.smem [#allocation6], 5
          %2630 = sst [smem:[%s2629]] 8
          %2632 = dma.general %s2614, 2048, %s2596, %s2582, [#allocation5], [#allocation6], %s2612, 0
        $region78: #{deconv_forward.1} parent=69 // pred_fallthru
          _
      $region70: #{deconv_forward.1} parent=5 // pred_fallthru
        _
      %p2633 = scmp.le.s32.totalorder 2, %s13
      // Predicated region
      $region79: #{deconv_forward.1} parent=5 // pred_check
        %p2634 = pneg %p2633
      $region80: #{deconv_forward.1} parent=5 // pred_check_branch
        %2636 = sbr.rel (%p2634) target = $region82
      $region81: #{deconv_forward.1} parent=5 // pred_region
        %s2637 = ssub.s32 %s13, 2
        // Predicated region
        $region83: #{deconv_forward.1} parent=81 // pred_check
          %p2638 = pneg %p147
        $region84: #{deconv_forward.1} parent=81 // pred_check_branch
          %2640 = sbr.rel (%p2638) target = $region86
        $region85: #{deconv_forward.1} parent=81 // pred_region
          %s2641 = sand.u32 %s132, 1
          %s2642 = scalar_lea.sflag [#allocation4], %s2641
          %s2643 = sand.u32 %s132, 1
          %s2644 = smul.addr %s2643, 128
          %s2645 = scalar_lea.vmem [#allocation3], %s2644
          %2646 = dma.done %s2642, 2048
        $region86: #{deconv_forward.1} parent=81 // pred_fallthru
          _
      $region82: #{deconv_forward.1} parent=5 // pred_fallthru
        _
    $region6: #{deconv_forward.1} parent=1 // loop_footer
      %s17 = sadd.s32 1, %s13
    $region7: #{deconv_forward.1} parent=1 // loop_footer_branch
      %12 = sbr.rel target = $region3
    $region8: #{deconv_forward.1} parent=1 // loop_exit
      _
    %2647 = vsyncpa [#allocation4], 1
    %s2648 = scalar_lea.sflag [#allocation4], 1
    %2649 = vsyncpa %s2648, 1

</llo_original>
